<compile_context>
chip_gen: v6e
topology: v6e:2x2x1
jax: 0.10.0
libtpu: 0.0.40
codegen_flags: <defaults>
</compile_context>

<pallas_src>
import math
from functools import partial

import jax
import jax.numpy as jnp
from jax import lax
from jax.experimental import pallas as pl
from jax.experimental.pallas import tpu as pltpu


def transformer_layer_kernel(x_ref,
                             wqkv_ref, bqkv_ref,
                             wout_ref, bout_ref,
                             wff_ref,
                             o_ref,
                             *, num_heads):
    # x_ref / o_ref: full (S, B, C) arrays in VMEM (PyTorch MHA layout).
    S, B, C = x_ref.shape
    hd = C // num_heads

    wqkv = wqkv_ref[...]          # (C, 3C)  q/k/v + in-proj + softmax scale folded
    bqkv = bqkv_ref[...]          # (1, 3C)
    wout = wout_ref[...]          # (C, C)   out-projection (x @ W layout)
    bout = bout_ref[...]          # (1, C)
    wff = wff_ref[...]            # (C, C)   fc1 @ fc2 folded (no bias, no act)

    # Fused qkv projection per batch element: B independent (S,C)x(C,3C) matmuls.
    xs = [x_ref[:, b, :] for b in range(B)]                               # (S, C)
    qkvs = [jnp.dot(xs[b], wqkv, preferred_element_type=jnp.float32) + bqkv
            for b in range(B)]                                            # (S, 3C)

    # Phase 1: all (b, h) score matmuls (independent MXU work; no kh.T).
    scores = []
    for b in range(B):
        for h in range(num_heads):
            lo = h * hd
            qh = qkvs[b][:, lo:lo + hd]               # softmax scale pre-folded
            kh = qkvs[b][:, C + lo:C + lo + hd]
            scores.append(lax.dot_general(
                qh, kh, (((1,), (1,)), ((), ())),     # contract both last dims
                preferred_element_type=jnp.float32))                      # (S, S)

    # Phase 2: all softmaxes (XLU max/sum, EUP exp, approx reciprocal + 1 NR step).
    probs = []
    for s in scores:
        s = s - jnp.max(s, axis=-1, keepdims=True)
        p = jnp.exp(s)
        d = jnp.sum(p, axis=-1, keepdims=True)
        r = pl.reciprocal(d, approx=True)
        r = r * (2.0 - d * r)                         # Newton-Raphson refinement
        probs.append(p * r)

    # Phase 3: all p@v matmuls; heads concatenated along lanes as values (no
    # VMEM scratch), then per-batch out-projection + residual, fused FF + residual.
    for b in range(B):
        outs = []
        for h in range(num_heads):
            lo = h * hd
            vh = qkvs[b][:, 2 * C + lo:2 * C + lo + hd]
            outs.append(jnp.dot(probs[b * num_heads + h], vh,
                                preferred_element_type=jnp.float32))      # (S, hd)
        heads = jnp.concatenate(outs, axis=-1)                            # (S, C)

        attn = jnp.dot(heads, wout, preferred_element_type=jnp.float32) + bout
        x1 = attn + xs[b]
        ff = jnp.dot(x1, wff, preferred_element_type=jnp.float32)
        o_ref[:, b, :] = (ff + x1).astype(o_ref.dtype)


def prepare_params(params, num_heads):
    """One-time weight folding into x @ W layout (hoisted out of the forward)."""
    C = params['q'].shape[0]
    hd = C // num_heads
    scale = 1.0 / math.sqrt(hd)
    hp = jax.lax.Precision.HIGHEST

    in_w, in_b = params['in_proj_w'], params['in_proj_b']
    wq_in, wk_in, wv_in = in_w[:C], in_w[C:2 * C], in_w[2 * C:]
    bq, bk, bv = in_b[:C], in_b[C:2 * C], in_b[2 * C:]

    # (x @ Wq^T) @ Wq_in^T == x @ (Wq^T @ Wq_in^T); fold softmax scale into q.
    wq_c = jnp.dot(params['q'].T, wq_in.T, precision=hp) * scale
    wk_c = jnp.dot(params['k'].T, wk_in.T, precision=hp)
    wv_c = jnp.dot(params['v'].T, wv_in.T, precision=hp)
    w_qkv = jnp.concatenate([wq_c, wk_c, wv_c], axis=1)                   # (C, 3C)
    b_qkv = jnp.concatenate([bq * scale, bk, bv]).reshape(1, 3 * C)       # (1, 3C)

    w_out = params['out_proj_w'].T                                        # (C, C)
    b_out = params['out_proj_b'].reshape(1, C)                            # (1, C)

    # fc2(fc1(x)) == x @ (fc1^T @ fc2^T)   (both Linear layers are bias=False)
    w_ff = jnp.dot(params['fc1'].T, params['fc2'].T, precision=hp)        # (C, C)

    return {'w_qkv': w_qkv, 'b_qkv': b_qkv,
            'w_out': w_out, 'b_out': b_out, 'w_ff': w_ff}


def transformer_layer(x, prepped, num_heads):
    """x: (S, B, C) float32 (PyTorch nn.MultiheadAttention default layout)."""
    S, B, C = x.shape
    vmem = pl.BlockSpec(memory_space=pltpu.MemorySpace.VMEM)   # full-array blocks
    return pl.pallas_call(
        partial(transformer_layer_kernel, num_heads=num_heads),
        out_shape=jax.ShapeDtypeStruct((S, B, C), x.dtype),
        in_specs=[vmem] * 6,
        out_specs=vmem,
    )(x, prepped['w_qkv'], prepped['b_qkv'],
      prepped['w_out'], prepped['b_out'], prepped['w_ff'])


def reference(x, params, num_heads):
    """Pure-JAX reference matching PyTorch semantics (unfolded weights)."""
    S, B, C = x.shape
    hd = C // num_heads
    q = x @ params['q'].T
    k = x @ params['k'].T
    v = x @ params['v'].T
    in_w, in_b = params['in_proj_w'], params['in_proj_b']
    qp = q @ in_w[:C].T + in_b[:C]
    kp = k @ in_w[C:2 * C].T + in_b[C:2 * C]
    vp = v @ in_w[2 * C:].T + in_b[2 * C:]

    def split(t):  # (S, B, C) -> (B, H, S, hd)
        return jnp.transpose(t.reshape(S, B, num_heads, hd), (1, 2, 0, 3))

    qh, kh, vh = split(qp), split(kp), split(vp)
    scores = jnp.einsum('bhqd,bhkd->bhqk', qh * (1.0 / math.sqrt(hd)), kh)
    p = jax.nn.softmax(scores, axis=-1)
    o = jnp.einsum('bhqk,bhkd->bhqd', p, vh)
    o = jnp.transpose(o, (2, 0, 1, 3)).reshape(S, B, C)
    attn = o @ params['out_proj_w'].T + params['out_proj_b']
    x1 = attn + x
    return (x1 @ params['fc1'].T) @ params['fc2'].T + x1


def make_params(key, c):
    ks = jax.random.split(key, 8)

    def w(k, shape, scale=0.1):
        return scale * jax.random.normal(k, shape, dtype=jnp.float32)

    return {
        'q': w(ks[0], (c, c)),
        'k': w(ks[1], (c, c)),
        'v': w(ks[2], (c, c)),
        'in_proj_w': w(ks[3], (3 * c, c)),
        'in_proj_b': w(ks[4], (3 * c,)),
        'out_proj_w': w(ks[5], (c, c)),
        'out_proj_b': w(ks[6], (c,)),
        'fc1': w(ks[7], (c, c)),
        'fc2': w(jax.random.fold_in(key, 99), (c, c)),
    }


if __name__ == "__main__":
    S, B, C, H = 8, 2, 32, 4        # seq=8, batch=2, embed=32, heads=4
    key = jax.random.PRNGKey(0)
    kx, kp = jax.random.split(key)
    x = jax.random.normal(kx, (S, B, C), dtype=jnp.float32)
    params = make_params(kp, C)

    # One-time weight folding (kept out of the per-forward path).
    prepped = prepare_params(params, H)

    fwd = jax.jit(partial(transformer_layer, num_heads=H))
    out = jax.block_until_ready(fwd(x, prepped))

    ref = reference(x, params, H)
    assert out.shape == (S, B, C)
    err = jnp.max(jnp.abs(out - ref))
    assert jnp.allclose(out, ref, rtol=1e-4, atol=1e-4), f"max abs err {err}"

    print("KERNEL_OK")
</pallas_src>

<mosaic_0001>
module attributes {stable_mosaic.version = 11 : i64} {
  func.func @transformer_layer_kernel(%arg0: memref<8x2x32xf32, #tpu.memory_space<vmem>>, %arg1: memref<32x96xf32, #tpu.memory_space<vmem>>, %arg2: memref<1x96xf32, #tpu.memory_space<vmem>>, %arg3: memref<32x32xf32, #tpu.memory_space<vmem>>, %arg4: memref<1x32xf32, #tpu.memory_space<vmem>>, %arg5: memref<32x32xf32, #tpu.memory_space<vmem>>, %arg6: memref<8x2x32xf32, #tpu.memory_space<vmem>>) attributes {dimension_semantics = [], scalar_prefetch = 0 : i64, scratch_operands = 0 : i64, tpu.core_type = #tpu.core_type<tc>} {
    %c0 = arith.constant 0 : index
    %c0_0 = arith.constant 0 : index
    %0 = vector.load %arg1[%c0, %c0_0] : memref<32x96xf32, #tpu.memory_space<vmem>>, vector<32x96xf32>
    %c0_1 = arith.constant 0 : index
    %c0_2 = arith.constant 0 : index
    %1 = vector.load %arg2[%c0_1, %c0_2] : memref<1x96xf32, #tpu.memory_space<vmem>>, vector<1x96xf32>
    %c0_3 = arith.constant 0 : index
    %c0_4 = arith.constant 0 : index
    %2 = vector.load %arg3[%c0_3, %c0_4] : memref<32x32xf32, #tpu.memory_space<vmem>>, vector<32x32xf32>
    %c0_5 = arith.constant 0 : index
    %c0_6 = arith.constant 0 : index
    %3 = vector.load %arg4[%c0_5, %c0_6] : memref<1x32xf32, #tpu.memory_space<vmem>>, vector<1x32xf32>
    %c0_7 = arith.constant 0 : index
    %c0_8 = arith.constant 0 : index
    %4 = vector.load %arg5[%c0_7, %c0_8] : memref<32x32xf32, #tpu.memory_space<vmem>>, vector<32x32xf32>
    %c0_9 = arith.constant 0 : index
    %c0_10 = arith.constant 0 : index
    %c0_11 = arith.constant 0 : index
    %5 = vector.load %arg0[%c0_9, %c0_10, %c0_11] : memref<8x2x32xf32, #tpu.memory_space<vmem>>, vector<8x1x32xf32>
    %6 = vector.shape_cast %5 : vector<8x1x32xf32> to vector<8x32xf32>
    %c0_12 = arith.constant 0 : index
    %c1 = arith.constant 1 : index
    %c0_13 = arith.constant 0 : index
    %7 = vector.load %arg0[%c0_12, %c1, %c0_13] : memref<8x2x32xf32, #tpu.memory_space<vmem>>, vector<8x1x32xf32>
    %8 = vector.shape_cast %7 : vector<8x1x32xf32> to vector<8x32xf32>
    %cst = arith.constant dense<0.000000e+00> : vector<8x96xf32>
    %9 = tpu.matmul %6, %0, %cst {dimension_numbers = #tpu.dot_dimension_numbers<[1], [0], [0], [1], [0, 0, 1, 1], [], []>} : vector<8x32xf32>, vector<32x96xf32>, vector<8x96xf32> -> vector<8x96xf32>
    %10 = vector.broadcast %1 : vector<1x96xf32> to vector<8x96xf32>
    %11 = arith.addf %9, %10 : vector<8x96xf32>
    %cst_14 = arith.constant dense<0.000000e+00> : vector<8x96xf32>
    %12 = tpu.matmul %8, %0, %cst_14 {dimension_numbers = #tpu.dot_dimension_numbers<[1], [0], [0], [1], [0, 0, 1, 1], [], []>} : vector<8x32xf32>, vector<32x96xf32>, vector<8x96xf32> -> vector<8x96xf32>
    %13 = vector.broadcast %1 : vector<1x96xf32> to vector<8x96xf32>
    %14 = arith.addf %12, %13 : vector<8x96xf32>
    %15 = vector.extract_strided_slice %11 {offsets = [0, 0], sizes = [8, 8], strides = [1, 1]} : vector<8x96xf32> to vector<8x8xf32>
    %16 = vector.extract_strided_slice %11 {offsets = [0, 32], sizes = [8, 8], strides = [1, 1]} : vector<8x96xf32> to vector<8x8xf32>
    %cst_15 = arith.constant dense<0.000000e+00> : vector<8x8xf32>
    %17 = tpu.matmul %15, %16, %cst_15 {dimension_numbers = #tpu.dot_dimension_numbers<[1], [1], [0], [0], [0, 0, 1, 0], [], []>} : vector<8x8xf32>, vector<8x8xf32>, vector<8x8xf32> -> vector<8x8xf32>
    %18 = vector.extract_strided_slice %11 {offsets = [0, 8], sizes = [8, 8], strides = [1, 1]} : vector<8x96xf32> to vector<8x8xf32>
    %19 = vector.extract_strided_slice %11 {offsets = [0, 40], sizes = [8, 8], strides = [1, 1]} : vector<8x96xf32> to vector<8x8xf32>
    %cst_16 = arith.constant dense<0.000000e+00> : vector<8x8xf32>
    %20 = tpu.matmul %18, %19, %cst_16 {dimension_numbers = #tpu.dot_dimension_numbers<[1], [1], [0], [0], [0, 0, 1, 0], [], []>} : vector<8x8xf32>, vector<8x8xf32>, vector<8x8xf32> -> vector<8x8xf32>
    %21 = vector.extract_strided_slice %11 {offsets = [0, 16], sizes = [8, 8], strides = [1, 1]} : vector<8x96xf32> to vector<8x8xf32>
    %22 = vector.extract_strided_slice %11 {offsets = [0, 48], sizes = [8, 8], strides = [1, 1]} : vector<8x96xf32> to vector<8x8xf32>
    %cst_17 = arith.constant dense<0.000000e+00> : vector<8x8xf32>
    %23 = tpu.matmul %21, %22, %cst_17 {dimension_numbers = #tpu.dot_dimension_numbers<[1], [1], [0], [0], [0, 0, 1, 0], [], []>} : vector<8x8xf32>, vector<8x8xf32>, vector<8x8xf32> -> vector<8x8xf32>
    %24 = vector.extract_strided_slice %11 {offsets = [0, 24], sizes = [8, 8], strides = [1, 1]} : vector<8x96xf32> to vector<8x8xf32>
    %25 = vector.extract_strided_slice %11 {offsets = [0, 56], sizes = [8, 8], strides = [1, 1]} : vector<8x96xf32> to vector<8x8xf32>
    %cst_18 = arith.constant dense<0.000000e+00> : vector<8x8xf32>
    %26 = tpu.matmul %24, %25, %cst_18 {dimension_numbers = #tpu.dot_dimension_numbers<[1], [1], [0], [0], [0, 0, 1, 0], [], []>} : vector<8x8xf32>, vector<8x8xf32>, vector<8x8xf32> -> vector<8x8xf32>
    %27 = vector.extract_strided_slice %14 {offsets = [0, 0], sizes = [8, 8], strides = [1, 1]} : vector<8x96xf32> to vector<8x8xf32>
    %28 = vector.extract_strided_slice %14 {offsets = [0, 32], sizes = [8, 8], strides = [1, 1]} : vector<8x96xf32> to vector<8x8xf32>
    %cst_19 = arith.constant dense<0.000000e+00> : vector<8x8xf32>
    %29 = tpu.matmul %27, %28, %cst_19 {dimension_numbers = #tpu.dot_dimension_numbers<[1], [1], [0], [0], [0, 0, 1, 0], [], []>} : vector<8x8xf32>, vector<8x8xf32>, vector<8x8xf32> -> vector<8x8xf32>
    %30 = vector.extract_strided_slice %14 {offsets = [0, 8], sizes = [8, 8], strides = [1, 1]} : vector<8x96xf32> to vector<8x8xf32>
    %31 = vector.extract_strided_slice %14 {offsets = [0, 40], sizes = [8, 8], strides = [1, 1]} : vector<8x96xf32> to vector<8x8xf32>
    %cst_20 = arith.constant dense<0.000000e+00> : vector<8x8xf32>
    %32 = tpu.matmul %30, %31, %cst_20 {dimension_numbers = #tpu.dot_dimension_numbers<[1], [1], [0], [0], [0, 0, 1, 0], [], []>} : vector<8x8xf32>, vector<8x8xf32>, vector<8x8xf32> -> vector<8x8xf32>
    %33 = vector.extract_strided_slice %14 {offsets = [0, 16], sizes = [8, 8], strides = [1, 1]} : vector<8x96xf32> to vector<8x8xf32>
    %34 = vector.extract_strided_slice %14 {offsets = [0, 48], sizes = [8, 8], strides = [1, 1]} : vector<8x96xf32> to vector<8x8xf32>
    %cst_21 = arith.constant dense<0.000000e+00> : vector<8x8xf32>
    %35 = tpu.matmul %33, %34, %cst_21 {dimension_numbers = #tpu.dot_dimension_numbers<[1], [1], [0], [0], [0, 0, 1, 0], [], []>} : vector<8x8xf32>, vector<8x8xf32>, vector<8x8xf32> -> vector<8x8xf32>
    %36 = vector.extract_strided_slice %14 {offsets = [0, 24], sizes = [8, 8], strides = [1, 1]} : vector<8x96xf32> to vector<8x8xf32>
    %37 = vector.extract_strided_slice %14 {offsets = [0, 56], sizes = [8, 8], strides = [1, 1]} : vector<8x96xf32> to vector<8x8xf32>
    %cst_22 = arith.constant dense<0.000000e+00> : vector<8x8xf32>
    %38 = tpu.matmul %36, %37, %cst_22 {dimension_numbers = #tpu.dot_dimension_numbers<[1], [1], [0], [0], [0, 0, 1, 0], [], []>} : vector<8x8xf32>, vector<8x8xf32>, vector<8x8xf32> -> vector<8x8xf32>
    %cst_23 = arith.constant dense<0xFF800000> : vector<8xf32>
    %39 = vector.multi_reduction <maximumf>, %17, %cst_23 [1] : vector<8x8xf32> to vector<8xf32>
    %40 = vector.shape_cast %39 : vector<8xf32> to vector<8x1xf32>
    %41 = vector.broadcast %40 : vector<8x1xf32> to vector<8x8xf32>
    %42 = arith.subf %17, %41 : vector<8x8xf32>
    %43 = math.exp %42 : vector<8x8xf32>
    %cst_24 = arith.constant dense<0.000000e+00> : vector<8xf32>
    %44 = vector.multi_reduction <add>, %43, %cst_24 [1] : vector<8x8xf32> to vector<8xf32>
    %45 = vector.shape_cast %44 : vector<8xf32> to vector<8x1xf32>
    %46 = tpu.reciprocal %45 {approx = true} : vector<8x1xf32> -> vector<8x1xf32>
    %47 = arith.mulf %45, %46 : vector<8x1xf32>
    %cst_25 = arith.constant 2.000000e+00 : f32
    %48 = vector.broadcast %cst_25 : f32 to vector<8x1xf32>
    %49 = arith.subf %48, %47 : vector<8x1xf32>
    %50 = arith.mulf %46, %49 : vector<8x1xf32>
    %51 = vector.broadcast %50 : vector<8x1xf32> to vector<8x8xf32>
    %52 = arith.mulf %43, %51 : vector<8x8xf32>
    %cst_26 = arith.constant dense<0xFF800000> : vector<8xf32>
    %53 = vector.multi_reduction <maximumf>, %20, %cst_26 [1] : vector<8x8xf32> to vector<8xf32>
    %54 = vector.shape_cast %53 : vector<8xf32> to vector<8x1xf32>
    %55 = vector.broadcast %54 : vector<8x1xf32> to vector<8x8xf32>
    %56 = arith.subf %20, %55 : vector<8x8xf32>
    %57 = math.exp %56 : vector<8x8xf32>
    %cst_27 = arith.constant dense<0.000000e+00> : vector<8xf32>
    %58 = vector.multi_reduction <add>, %57, %cst_27 [1] : vector<8x8xf32> to vector<8xf32>
    %59 = vector.shape_cast %58 : vector<8xf32> to vector<8x1xf32>
    %60 = tpu.reciprocal %59 {approx = true} : vector<8x1xf32> -> vector<8x1xf32>
    %61 = arith.mulf %59, %60 : vector<8x1xf32>
    %cst_28 = arith.constant 2.000000e+00 : f32
    %62 = vector.broadcast %cst_28 : f32 to vector<8x1xf32>
    %63 = arith.subf %62, %61 : vector<8x1xf32>
    %64 = arith.mulf %60, %63 : vector<8x1xf32>
    %65 = vector.broadcast %64 : vector<8x1xf32> to vector<8x8xf32>
    %66 = arith.mulf %57, %65 : vector<8x8xf32>
    %cst_29 = arith.constant dense<0xFF800000> : vector<8xf32>
    %67 = vector.multi_reduction <maximumf>, %23, %cst_29 [1] : vector<8x8xf32> to vector<8xf32>
    %68 = vector.shape_cast %67 : vector<8xf32> to vector<8x1xf32>
    %69 = vector.broadcast %68 : vector<8x1xf32> to vector<8x8xf32>
    %70 = arith.subf %23, %69 : vector<8x8xf32>
    %71 = math.exp %70 : vector<8x8xf32>
    %cst_30 = arith.constant dense<0.000000e+00> : vector<8xf32>
    %72 = vector.multi_reduction <add>, %71, %cst_30 [1] : vector<8x8xf32> to vector<8xf32>
    %73 = vector.shape_cast %72 : vector<8xf32> to vector<8x1xf32>
    %74 = tpu.reciprocal %73 {approx = true} : vector<8x1xf32> -> vector<8x1xf32>
    %75 = arith.mulf %73, %74 : vector<8x1xf32>
    %cst_31 = arith.constant 2.000000e+00 : f32
    %76 = vector.broadcast %cst_31 : f32 to vector<8x1xf32>
    %77 = arith.subf %76, %75 : vector<8x1xf32>
    %78 = arith.mulf %74, %77 : vector<8x1xf32>
    %79 = vector.broadcast %78 : vector<8x1xf32> to vector<8x8xf32>
    %80 = arith.mulf %71, %79 : vector<8x8xf32>
    %cst_32 = arith.constant dense<0xFF800000> : vector<8xf32>
    %81 = vector.multi_reduction <maximumf>, %26, %cst_32 [1] : vector<8x8xf32> to vector<8xf32>
    %82 = vector.shape_cast %81 : vector<8xf32> to vector<8x1xf32>
    %83 = vector.broadcast %82 : vector<8x1xf32> to vector<8x8xf32>
    %84 = arith.subf %26, %83 : vector<8x8xf32>
    %85 = math.exp %84 : vector<8x8xf32>
    %cst_33 = arith.constant dense<0.000000e+00> : vector<8xf32>
    %86 = vector.multi_reduction <add>, %85, %cst_33 [1] : vector<8x8xf32> to vector<8xf32>
    %87 = vector.shape_cast %86 : vector<8xf32> to vector<8x1xf32>
    %88 = tpu.reciprocal %87 {approx = true} : vector<8x1xf32> -> vector<8x1xf32>
    %89 = arith.mulf %87, %88 : vector<8x1xf32>
    %cst_34 = arith.constant 2.000000e+00 : f32
    %90 = vector.broadcast %cst_34 : f32 to vector<8x1xf32>
    %91 = arith.subf %90, %89 : vector<8x1xf32>
    %92 = arith.mulf %88, %91 : vector<8x1xf32>
    %93 = vector.broadcast %92 : vector<8x1xf32> to vector<8x8xf32>
    %94 = arith.mulf %85, %93 : vector<8x8xf32>
    %cst_35 = arith.constant dense<0xFF800000> : vector<8xf32>
    %95 = vector.multi_reduction <maximumf>, %29, %cst_35 [1] : vector<8x8xf32> to vector<8xf32>
    %96 = vector.shape_cast %95 : vector<8xf32> to vector<8x1xf32>
    %97 = vector.broadcast %96 : vector<8x1xf32> to vector<8x8xf32>
    %98 = arith.subf %29, %97 : vector<8x8xf32>
    %99 = math.exp %98 : vector<8x8xf32>
    %cst_36 = arith.constant dense<0.000000e+00> : vector<8xf32>
    %100 = vector.multi_reduction <add>, %99, %cst_36 [1] : vector<8x8xf32> to vector<8xf32>
    %101 = vector.shape_cast %100 : vector<8xf32> to vector<8x1xf32>
    %102 = tpu.reciprocal %101 {approx = true} : vector<8x1xf32> -> vector<8x1xf32>
    %103 = arith.mulf %101, %102 : vector<8x1xf32>
    %cst_37 = arith.constant 2.000000e+00 : f32
    %104 = vector.broadcast %cst_37 : f32 to vector<8x1xf32>
    %105 = arith.subf %104, %103 : vector<8x1xf32>
    %106 = arith.mulf %102, %105 : vector<8x1xf32>
    %107 = vector.broadcast %106 : vector<8x1xf32> to vector<8x8xf32>
    %108 = arith.mulf %99, %107 : vector<8x8xf32>
    %cst_38 = arith.constant dense<0xFF800000> : vector<8xf32>
    %109 = vector.multi_reduction <maximumf>, %32, %cst_38 [1] : vector<8x8xf32> to vector<8xf32>
    %110 = vector.shape_cast %109 : vector<8xf32> to vector<8x1xf32>
    %111 = vector.broadcast %110 : vector<8x1xf32> to vector<8x8xf32>
    %112 = arith.subf %32, %111 : vector<8x8xf32>
    %113 = math.exp %112 : vector<8x8xf32>
    %cst_39 = arith.constant dense<0.000000e+00> : vector<8xf32>
    %114 = vector.multi_reduction <add>, %113, %cst_39 [1] : vector<8x8xf32> to vector<8xf32>
    %115 = vector.shape_cast %114 : vector<8xf32> to vector<8x1xf32>
    %116 = tpu.reciprocal %115 {approx = true} : vector<8x1xf32> -> vector<8x1xf32>
    %117 = arith.mulf %115, %116 : vector<8x1xf32>
    %cst_40 = arith.constant 2.000000e+00 : f32
    %118 = vector.broadcast %cst_40 : f32 to vector<8x1xf32>
    %119 = arith.subf %118, %117 : vector<8x1xf32>
    %120 = arith.mulf %116, %119 : vector<8x1xf32>
    %121 = vector.broadcast %120 : vector<8x1xf32> to vector<8x8xf32>
    %122 = arith.mulf %113, %121 : vector<8x8xf32>
    %cst_41 = arith.constant dense<0xFF800000> : vector<8xf32>
    %123 = vector.multi_reduction <maximumf>, %35, %cst_41 [1] : vector<8x8xf32> to vector<8xf32>
    %124 = vector.shape_cast %123 : vector<8xf32> to vector<8x1xf32>
    %125 = vector.broadcast %124 : vector<8x1xf32> to vector<8x8xf32>
    %126 = arith.subf %35, %125 : vector<8x8xf32>
    %127 = math.exp %126 : vector<8x8xf32>
    %cst_42 = arith.constant dense<0.000000e+00> : vector<8xf32>
    %128 = vector.multi_reduction <add>, %127, %cst_42 [1] : vector<8x8xf32> to vector<8xf32>
    %129 = vector.shape_cast %128 : vector<8xf32> to vector<8x1xf32>
    %130 = tpu.reciprocal %129 {approx = true} : vector<8x1xf32> -> vector<8x1xf32>
    %131 = arith.mulf %129, %130 : vector<8x1xf32>
    %cst_43 = arith.constant 2.000000e+00 : f32
    %132 = vector.broadcast %cst_43 : f32 to vector<8x1xf32>
    %133 = arith.subf %132, %131 : vector<8x1xf32>
    %134 = arith.mulf %130, %133 : vector<8x1xf32>
    %135 = vector.broadcast %134 : vector<8x1xf32> to vector<8x8xf32>
    %136 = arith.mulf %127, %135 : vector<8x8xf32>
    %cst_44 = arith.constant dense<0xFF800000> : vector<8xf32>
    %137 = vector.multi_reduction <maximumf>, %38, %cst_44 [1] : vector<8x8xf32> to vector<8xf32>
    %138 = vector.shape_cast %137 : vector<8xf32> to vector<8x1xf32>
    %139 = vector.broadcast %138 : vector<8x1xf32> to vector<8x8xf32>
    %140 = arith.subf %38, %139 : vector<8x8xf32>
    %141 = math.exp %140 : vector<8x8xf32>
    %cst_45 = arith.constant dense<0.000000e+00> : vector<8xf32>
    %142 = vector.multi_reduction <add>, %141, %cst_45 [1] : vector<8x8xf32> to vector<8xf32>
    %143 = vector.shape_cast %142 : vector<8xf32> to vector<8x1xf32>
    %144 = tpu.reciprocal %143 {approx = true} : vector<8x1xf32> -> vector<8x1xf32>
    %145 = arith.mulf %143, %144 : vector<8x1xf32>
    %cst_46 = arith.constant 2.000000e+00 : f32
    %146 = vector.broadcast %cst_46 : f32 to vector<8x1xf32>
    %147 = arith.subf %146, %145 : vector<8x1xf32>
    %148 = arith.mulf %144, %147 : vector<8x1xf32>
    %149 = vector.broadcast %148 : vector<8x1xf32> to vector<8x8xf32>
    %150 = arith.mulf %141, %149 : vector<8x8xf32>
    %151 = vector.extract_strided_slice %11 {offsets = [0, 64], sizes = [8, 8], strides = [1, 1]} : vector<8x96xf32> to vector<8x8xf32>
    %cst_47 = arith.constant dense<0.000000e+00> : vector<8x8xf32>
    %152 = tpu.matmul %52, %151, %cst_47 {dimension_numbers = #tpu.dot_dimension_numbers<[1], [0], [0], [1], [0, 0, 1, 1], [], []>} : vector<8x8xf32>, vector<8x8xf32>, vector<8x8xf32> -> vector<8x8xf32>
    %153 = vector.extract_strided_slice %11 {offsets = [0, 72], sizes = [8, 8], strides = [1, 1]} : vector<8x96xf32> to vector<8x8xf32>
    %cst_48 = arith.constant dense<0.000000e+00> : vector<8x8xf32>
    %154 = tpu.matmul %66, %153, %cst_48 {dimension_numbers = #tpu.dot_dimension_numbers<[1], [0], [0], [1], [0, 0, 1, 1], [], []>} : vector<8x8xf32>, vector<8x8xf32>, vector<8x8xf32> -> vector<8x8xf32>
    %155 = vector.extract_strided_slice %11 {offsets = [0, 80], sizes = [8, 8], strides = [1, 1]} : vector<8x96xf32> to vector<8x8xf32>
    %cst_49 = arith.constant dense<0.000000e+00> : vector<8x8xf32>
    %156 = tpu.matmul %80, %155, %cst_49 {dimension_numbers = #tpu.dot_dimension_numbers<[1], [0], [0], [1], [0, 0, 1, 1], [], []>} : vector<8x8xf32>, vector<8x8xf32>, vector<8x8xf32> -> vector<8x8xf32>
    %157 = vector.extract_strided_slice %11 {offsets = [0, 88], sizes = [8, 8], strides = [1, 1]} : vector<8x96xf32> to vector<8x8xf32>
    %cst_50 = arith.constant dense<0.000000e+00> : vector<8x8xf32>
    %158 = tpu.matmul %94, %157, %cst_50 {dimension_numbers = #tpu.dot_dimension_numbers<[1], [0], [0], [1], [0, 0, 1, 1], [], []>} : vector<8x8xf32>, vector<8x8xf32>, vector<8x8xf32> -> vector<8x8xf32>
    %159 = tpu.concatenate %152, %154, %156, %158 in 1 : vector<8x8xf32>, vector<8x8xf32>, vector<8x8xf32>, vector<8x8xf32> -> vector<8x32xf32>
    %cst_51 = arith.constant dense<0.000000e+00> : vector<8x32xf32>
    %160 = tpu.matmul %159, %2, %cst_51 {dimension_numbers = #tpu.dot_dimension_numbers<[1], [0], [0], [1], [0, 0, 1, 1], [], []>} : vector<8x32xf32>, vector<32x32xf32>, vector<8x32xf32> -> vector<8x32xf32>
    %161 = vector.broadcast %3 : vector<1x32xf32> to vector<8x32xf32>
    %162 = arith.addf %160, %161 : vector<8x32xf32>
    %163 = arith.addf %162, %6 : vector<8x32xf32>
    %cst_52 = arith.constant dense<0.000000e+00> : vector<8x32xf32>
    %164 = tpu.matmul %163, %4, %cst_52 {dimension_numbers = #tpu.dot_dimension_numbers<[1], [0], [0], [1], [0, 0, 1, 1], [], []>} : vector<8x32xf32>, vector<32x32xf32>, vector<8x32xf32> -> vector<8x32xf32>
    %165 = arith.addf %164, %163 : vector<8x32xf32>
    %c0_53 = arith.constant 0 : index
    %c0_54 = arith.constant 0 : index
    %c0_55 = arith.constant 0 : index
    %166 = vector.load %arg6[%c0_53, %c0_54, %c0_55] : memref<8x2x32xf32, #tpu.memory_space<vmem>>, vector<8x1x32xf32>
    %167 = vector.shape_cast %166 : vector<8x1x32xf32> to vector<8x32xf32>
    %168 = vector.shape_cast %165 : vector<8x32xf32> to vector<8x1x32xf32>
    tpu.vector_store %arg6[%c0_53, %c0_54, %c0_55], %168 {strides = array<i32>} : memref<8x2x32xf32, #tpu.memory_space<vmem>>, vector<8x1x32xf32>,
    %169 = vector.extract_strided_slice %14 {offsets = [0, 64], sizes = [8, 8], strides = [1, 1]} : vector<8x96xf32> to vector<8x8xf32>
    %cst_56 = arith.constant dense<0.000000e+00> : vector<8x8xf32>
    %170 = tpu.matmul %108, %169, %cst_56 {dimension_numbers = #tpu.dot_dimension_numbers<[1], [0], [0], [1], [0, 0, 1, 1], [], []>} : vector<8x8xf32>, vector<8x8xf32>, vector<8x8xf32> -> vector<8x8xf32>
    %171 = vector.extract_strided_slice %14 {offsets = [0, 72], sizes = [8, 8], strides = [1, 1]} : vector<8x96xf32> to vector<8x8xf32>
    %cst_57 = arith.constant dense<0.000000e+00> : vector<8x8xf32>
    %172 = tpu.matmul %122, %171, %cst_57 {dimension_numbers = #tpu.dot_dimension_numbers<[1], [0], [0], [1], [0, 0, 1, 1], [], []>} : vector<8x8xf32>, vector<8x8xf32>, vector<8x8xf32> -> vector<8x8xf32>
    %173 = vector.extract_strided_slice %14 {offsets = [0, 80], sizes = [8, 8], strides = [1, 1]} : vector<8x96xf32> to vector<8x8xf32>
    %cst_58 = arith.constant dense<0.000000e+00> : vector<8x8xf32>
    %174 = tpu.matmul %136, %173, %cst_58 {dimension_numbers = #tpu.dot_dimension_numbers<[1], [0], [0], [1], [0, 0, 1, 1], [], []>} : vector<8x8xf32>, vector<8x8xf32>, vector<8x8xf32> -> vector<8x8xf32>
    %175 = vector.extract_strided_slice %14 {offsets = [0, 88], sizes = [8, 8], strides = [1, 1]} : vector<8x96xf32> to vector<8x8xf32>
    %cst_59 = arith.constant dense<0.000000e+00> : vector<8x8xf32>
    %176 = tpu.matmul %150, %175, %cst_59 {dimension_numbers = #tpu.dot_dimension_numbers<[1], [0], [0], [1], [0, 0, 1, 1], [], []>} : vector<8x8xf32>, vector<8x8xf32>, vector<8x8xf32> -> vector<8x8xf32>
    %177 = tpu.concatenate %170, %172, %174, %176 in 1 : vector<8x8xf32>, vector<8x8xf32>, vector<8x8xf32>, vector<8x8xf32> -> vector<8x32xf32>
    %cst_60 = arith.constant dense<0.000000e+00> : vector<8x32xf32>
    %178 = tpu.matmul %177, %2, %cst_60 {dimension_numbers = #tpu.dot_dimension_numbers<[1], [0], [0], [1], [0, 0, 1, 1], [], []>} : vector<8x32xf32>, vector<32x32xf32>, vector<8x32xf32> -> vector<8x32xf32>
    %179 = vector.broadcast %3 : vector<1x32xf32> to vector<8x32xf32>
    %180 = arith.addf %178, %179 : vector<8x32xf32>
    %181 = arith.addf %180, %8 : vector<8x32xf32>
    %cst_61 = arith.constant dense<0.000000e+00> : vector<8x32xf32>
    %182 = tpu.matmul %181, %4, %cst_61 {dimension_numbers = #tpu.dot_dimension_numbers<[1], [0], [0], [1], [0, 0, 1, 1], [], []>} : vector<8x32xf32>, vector<32x32xf32>, vector<8x32xf32> -> vector<8x32xf32>
    %183 = arith.addf %182, %181 : vector<8x32xf32>
    %c0_62 = arith.constant 0 : index
    %c1_63 = arith.constant 1 : index
    %c0_64 = arith.constant 0 : index
    %184 = vector.load %arg6[%c0_62, %c1_63, %c0_64] : memref<8x2x32xf32, #tpu.memory_space<vmem>>, vector<8x1x32xf32>
    %185 = vector.shape_cast %184 : vector<8x1x32xf32> to vector<8x32xf32>
    %186 = vector.shape_cast %183 : vector<8x32xf32> to vector<8x1x32xf32>
    tpu.vector_store %arg6[%c0_62, %c1_63, %c0_64], %186 {strides = array<i32>} : memref<8x2x32xf32, #tpu.memory_space<vmem>>, vector<8x1x32xf32>,
    return
  }
}

</mosaic_0001>

<llo_original>
// kernel: transformer_layer.1
$region0: #{transformer_layer.1}
  #allocation0 [shape = 'u32[]', space=smem, size = 0x4, offset = 0x4, fixed_abs, tag = 'smem constant byte address 0x4 - core index']
  #allocation1 [shape = 'u32[144,128]{1,0:T(1,128)}', space=vmem, size = 0x12000, scoped, tag = 'internal scratch']
  %s0 = inlined_call_operand.hbm [shape: f32[8,2,32], index: 0, kind: input, shape index: {}]
  %s1 = inlined_call_operand.hbm [shape: f32[32,96], index: 1, kind: input, shape index: {}]
  %s2 = inlined_call_operand.vmem [shape: f32[1,96], index: 2, kind: input, shape index: {}]
  %s3 = inlined_call_operand.hbm [shape: f32[32,32], index: 3, kind: input, shape index: {}]
  %s4 = inlined_call_operand.hbm [shape: f32[1,32], index: 4, kind: input, shape index: {}]
  %s5 = inlined_call_operand.hbm [shape: f32[32,32], index: 5, kind: input, shape index: {}]
  %s6 = inlined_call_operand.hbm [shape: f32[8,2,32], index: 6, kind: output, shape index: {}]
  %s7 = sld [smem:[#allocation0]]
  $region54: #{transformer_layer.1} parent=0
    _
  %s9 = ssub.s32 1, %s7
  %s10 = scalar_select 0, %s9, %s7
  $region1: #{transformer_layer.1} parent=0
    #allocation2 [shape = 'u8[8192]{0}', space=vmem, size = 0x2000, scoped, tag = 'input window, operand 0, single buffered']
    #allocation3 [shape = 's32[1]{0}', space=sflag, size = 0x4, scoped, tag = 'scoped memory for transformer_layer.1']
    #allocation4 [shape = 's32[1]{0}', space=sflag, size = 0x4, scoped, tag = 'scoped memory for transformer_layer.1']
    #allocation5 [shape = 'u8[16384]{0}', space=vmem, size = 0x4000, scoped, tag = 'input window, operand 1, single buffered']
    #allocation6 [shape = 's32[1]{0}', space=sflag, size = 0x4, scoped, tag = 'scoped memory for transformer_layer.1']
    #allocation7 [shape = 'u8[16384]{0}', space=vmem, size = 0x4000, scoped, tag = 'input window, operand 3, single buffered']
    #allocation8 [shape = 'u8[512]{0}', space=vmem, size = 0x400, scoped, tag = 'input window, operand 4, single buffered']
    #allocation9 [shape = 's32[1]{0}', space=sflag, size = 0x4, scoped, tag = 'scoped memory for transformer_layer.1']
    #allocation10 [shape = 'u8[16384]{0}', space=vmem, size = 0x4000, scoped, tag = 'input window, operand 5, single buffered']
    #allocation11 [shape = 'u8[8192]{0}', space=vmem, size = 0x2000, scoped, tag = 'output window, operand 0, single buffered']
    %11 = vsyncpa [#allocation3], 0
    %12 = vsyncpa [#allocation6], 0
    %13 = vsyncpa [#allocation9], 0
    %14 = vsyncpa [#allocation4], 0
    // Predicated region
    $region2: #{transformer_layer.1} parent=1 // pred_check
      _
    $region3: #{transformer_layer.1} parent=1 // pred_check_branch
      %16 = sbr.rel (0) target = $region5
    $region4: #{transformer_layer.1} parent=1 // pred_region
      %s18 = ssub.s32 256, 256
      %19 = vsyncadd [#allocation3], %s18
      %s20 = sshll.u32 [#allocation2], 4
      %s21 = int_to_ptr.vmem [resolvable:$true] %s20
      %26 = dma.hbm_to_vmem [thread:$0]  %s0, 256, %s21, [#allocation3], 32, 32, 2
    $region5: #{transformer_layer.1} parent=1 // pred_fallthru
      _
    // Predicated region
    $region6: #{transformer_layer.1} parent=1 // pred_check
      _
    $region7: #{transformer_layer.1} parent=1 // pred_check_branch
      %28 = sbr.rel (0) target = $region9
    $region8: #{transformer_layer.1} parent=1 // pred_region
      %s30 = ssub.s32 512, 512
      %31 = vsyncadd [#allocation6], %s30
      %s32 = sshll.u32 [#allocation5], 4
      %s33 = int_to_ptr.vmem [resolvable:$true] %s32
      %38 = dma.hbm_to_vmem [thread:$0]  %s1, 512, %s33, [#allocation6], 128, 128, 8
    $region9: #{transformer_layer.1} parent=1 // pred_fallthru
      _
    // Predicated region
    $region10: #{transformer_layer.1} parent=1 // pred_check
      _
    $region11: #{transformer_layer.1} parent=1 // pred_check_branch
      %40 = sbr.rel (0) target = $region13
    $region12: #{transformer_layer.1} parent=1 // pred_region
      _
    $region13: #{transformer_layer.1} parent=1 // pred_fallthru
      _
    // Predicated region
    $region14: #{transformer_layer.1} parent=1 // pred_check
      _
    $region15: #{transformer_layer.1} parent=1 // pred_check_branch
      %42 = sbr.rel (0) target = $region17
    $region16: #{transformer_layer.1} parent=1 // pred_region
      %s44 = ssub.s32 512, 512
      %45 = vsyncadd [#allocation6], %s44
      %s46 = sshll.u32 [#allocation7], 4
      %s47 = int_to_ptr.vmem [resolvable:$true] %s46
      %52 = dma.hbm_to_vmem [thread:$0]  %s3, 512, %s47, [#allocation6], 128, 128, 8
    $region17: #{transformer_layer.1} parent=1 // pred_fallthru
      _
    // Predicated region
    $region18: #{transformer_layer.1} parent=1 // pred_check
      _
    $region19: #{transformer_layer.1} parent=1 // pred_check_branch
      %54 = sbr.rel (0) target = $region21
    $region20: #{transformer_layer.1} parent=1 // pred_region
      %s56 = ssub.s32 16, 16
      %57 = vsyncadd [#allocation9], %s56
      %s59 = sshll.u32 [#allocation8], 4
      %s60 = int_to_ptr.vmem [resolvable:$true] %s59
      %62 = dma.hbm_to_vmem [thread:$0]  %s4, 16, %s60, [#allocation9]
    $region21: #{transformer_layer.1} parent=1 // pred_fallthru
      _
    // Predicated region
    $region22: #{transformer_layer.1} parent=1 // pred_check
      _
    $region23: #{transformer_layer.1} parent=1 // pred_check_branch
      %64 = sbr.rel (0) target = $region25
    $region24: #{transformer_layer.1} parent=1 // pred_region
      %s66 = ssub.s32 512, 512
      %67 = vsyncadd [#allocation9], %s66
      %s68 = sshll.u32 [#allocation10], 4
      %s69 = int_to_ptr.vmem [resolvable:$true] %s68
      %74 = dma.hbm_to_vmem [thread:$0]  %s5, 512, %s69, [#allocation9], 128, 128, 8
    $region25: #{transformer_layer.1} parent=1 // pred_fallthru
      _
    // Predicated region
    $region26: #{transformer_layer.1} parent=1 // pred_check
      _
    $region27: #{transformer_layer.1} parent=1 // pred_check_branch
      %76 = sbr.rel (0) target = $region29
    $region28: #{transformer_layer.1} parent=1 // pred_region
      %77 = dma.done [#allocation3], 256
    $region29: #{transformer_layer.1} parent=1 // pred_fallthru
      _
    // Predicated region
    $region30: #{transformer_layer.1} parent=1 // pred_check
      _
    $region31: #{transformer_layer.1} parent=1 // pred_check_branch
      %79 = sbr.rel (0) target = $region33
    $region32: #{transformer_layer.1} parent=1 // pred_region
      %80 = dma.done [#allocation6], 512
    $region33: #{transformer_layer.1} parent=1 // pred_fallthru
      _
    // Predicated region
    $region34: #{transformer_layer.1} parent=1 // pred_check
      _
    $region35: #{transformer_layer.1} parent=1 // pred_check_branch
      %82 = sbr.rel (0) target = $region37
    $region36: #{transformer_layer.1} parent=1 // pred_region
      %83 = dma.done [#allocation6], 512
    $region37: #{transformer_layer.1} parent=1 // pred_fallthru
      _
    // Predicated region
    $region38: #{transformer_layer.1} parent=1 // pred_check
      _
    $region39: #{transformer_layer.1} parent=1 // pred_check_branch
      %85 = sbr.rel (0) target = $region41
    $region40: #{transformer_layer.1} parent=1 // pred_region
      %86 = dma.done [#allocation9], 16
    $region41: #{transformer_layer.1} parent=1 // pred_fallthru
      _
    // Predicated region
    $region42: #{transformer_layer.1} parent=1 // pred_check
      _
    $region43: #{transformer_layer.1} parent=1 // pred_check_branch
      %88 = sbr.rel (0) target = $region45
    $region44: #{transformer_layer.1} parent=1 // pred_region
      %89 = dma.done [#allocation9], 512
    $region45: #{transformer_layer.1} parent=1 // pred_fallthru
      _
    %v90 = vld [vmem:[#allocation5] sm:$0xff]
    %v91 = vld [vmem:[#allocation5 + $0x8] sm:$0xff]
    %v92 = vld [vmem:[#allocation5 + $0x10] sm:$0xff]
    %v93 = vld [vmem:[#allocation5 + $0x18] sm:$0xff]
    %v94 = vld [vmem:[%s2] sm:$0x1]
    %v95 = vld [vmem:[#allocation7] sm:$0xff]
    %v96 = vld [vmem:[#allocation7 + $0x8] sm:$0xff]
    %v97 = vld [vmem:[#allocation7 + $0x10] sm:$0xff]
    %v98 = vld [vmem:[#allocation7 + $0x18] sm:$0xff]
    %v99 = vld [vmem:[#allocation8] sm:$0x1]
    %v100 = vld [vmem:[#allocation10] sm:$0xff]
    %v101 = vld [vmem:[#allocation10 + $0x8] sm:$0xff]
    %v102 = vld [vmem:[#allocation10 + $0x10] sm:$0xff]
    %v103 = vld [vmem:[#allocation10 + $0x18] sm:$0xff]
    %v104 = vld [vmem:[#allocation2] sm:$0x1]
    %v105 = vld [vmem:[#allocation2 + $0x2] sm:$0x1]
    %v106 = vld [vmem:[#allocation2 + $0x4] sm:$0x1]
    %v107 = vld [vmem:[#allocation2 + $0x6] sm:$0x1]
    %v108 = vld [vmem:[#allocation2 + $0x8] sm:$0x1]
    %v109 = vld [vmem:[#allocation2 + $0xa] sm:$0x1]
    %v110 = vld [vmem:[#allocation2 + $0xc] sm:$0x1]
    %v111 = vld [vmem:[#allocation2 + $0xe] sm:$0x1]
    %v112 = vld [vmem:[#allocation2 + $0x1] sm:$0x1]
    %v113 = vld [vmem:[#allocation2 + $0x3] sm:$0x1]
    %v114 = vld [vmem:[#allocation2 + $0x5] sm:$0x1]
    %v115 = vld [vmem:[#allocation2 + $0x7] sm:$0x1]
    %v116 = vld [vmem:[#allocation2 + $0x9] sm:$0x1]
    %v117 = vld [vmem:[#allocation2 + $0xb] sm:$0x1]
    %v118 = vld [vmem:[#allocation2 + $0xd] sm:$0x1]
    %v119 = vld [vmem:[#allocation2 + $0xf] sm:$0x1]
    %v121 = vlaneseq
    %v122 = vshrl.u32 %v121, 7
    %v123 = vsub.s32 0, %v122
    %v124 = vrot.slane %v94, %v123
    %v134 = vrot.slane %v105, 7
    %vm135 = vcmask 1041409
    %v136 = vsel %vm135, %v134, %v104
    %v137 = vrot.slane %v106, 6
    %vm138 = vcmask 1042434
    %v139 = vsel %vm138, %v137, %v136
    %v140 = vrot.slane %v107, 5
    %vm141 = vcmask 1043459
    %v142 = vsel %vm141, %v140, %v139
    %v143 = vrot.slane %v108, 4
    %vm144 = vcmask 1044484
    %v145 = vsel %vm144, %v143, %v142
    %v146 = vrot.slane %v109, 3
    %vm147 = vcmask 1045509
    %v148 = vsel %vm147, %v146, %v145
    %v149 = vrot.slane %v110, 2
    %vm150 = vcmask 1046534
    %v151 = vsel %vm150, %v149, %v148
    %v152 = vrot.slane %v111, 1
    %vm153 = vcmask 1047559
    %v154 = vsel %vm153, %v152, %v151
    %vm155 = vcmask 261120
    %v156 = vsel %vm155, %v154, 0
    %158 = vmatprep.subr.mxu0 0.0
    %159 = vmatpush1.msra.mxu0 0.0
    %160 = vmatprep.subr.mxu0 0.0
    %161 = vmatpush1.msra.mxu0 0.0
    %162 = vmatprep.subr.mxu0 0.0
    %163 = vmatpush1.msra.mxu0 0.0
    %164 = vmatprep.subr.mxu0 0.0
    %165 = vmatpush1.msra.mxu0 0.0
    %166 = vmatprep.subr.mxu0 0.0
    %167 = vmatpush1.msra.mxu0 0.0
    %168 = vmatprep.subr.mxu0 0.0
    %169 = vmatpush1.msra.mxu0 0.0
    %170 = vmatprep.subr.mxu0 0.0
    %171 = vmatpush1.msra.mxu0 0.0
    %172 = vmatprep.subr.mxu0 0.0
    %173 = vmatpush1.msra.mxu0 0.0
    %174 = vmatprep.subr.mxu0 0.0
    %175 = vmatpush1.msra.mxu0 0.0
    %176 = vmatprep.subr.mxu0 0.0
    %177 = vmatpush1.msra.mxu0 0.0
    %178 = vmatprep.subr.mxu0 0.0
    %179 = vmatpush1.msra.mxu0 0.0
    %180 = vmatprep.subr.mxu0 0.0
    %181 = vmatpush1.msra.mxu0 0.0
    %182 = vmatprep.subr.mxu0 0.0
    %183 = vmatpush1.msra.mxu0 %v93
    %184 = vmatprep.subr.mxu0 0.0
    %185 = vmatpush1.msra.mxu0 %v92
    %186 = vmatprep.subr.mxu0 0.0
    %187 = vmatpush1.msra.mxu0 %v91
    %188 = vmatprep.subr.mxu0 0.0
    %189 = vmatpush1.msra.mxu0 %v90
    %190 = vmatprep.subr.mxu0 0.0
    %191 = vmatpush2.msra.mxu0 0.0
    %192 = vmatprep.subr.mxu0 0.0
    %193 = vmatpush2.msra.mxu0 0.0
    %194 = vmatprep.subr.mxu0 0.0
    %195 = vmatpush2.msra.mxu0 0.0
    %196 = vmatprep.subr.mxu0 0.0
    %197 = vmatpush2.msra.mxu0 0.0
    %198 = vmatprep.subr.mxu0 0.0
    %199 = vmatpush2.msra.mxu0 0.0
    %200 = vmatprep.subr.mxu0 0.0
    %201 = vmatpush2.msra.mxu0 0.0
    %202 = vmatprep.subr.mxu0 0.0
    %203 = vmatpush2.msra.mxu0 0.0
    %204 = vmatprep.subr.mxu0 0.0
    %205 = vmatpush2.msra.mxu0 0.0
    %206 = vmatprep.subr.mxu0 0.0
    %207 = vmatpush2.msra.mxu0 0.0
    %208 = vmatprep.subr.mxu0 0.0
    %209 = vmatpush2.msra.mxu0 0.0
    %210 = vmatprep.subr.mxu0 0.0
    %211 = vmatpush2.msra.mxu0 0.0
    %212 = vmatprep.subr.mxu0 0.0
    %213 = vmatpush2.msra.mxu0 0.0
    %214 = vmatprep.subr.mxu0 0.0
    %215 = vmatpush2.msra.mxu0 0.0
    %216 = vmatprep.subr.mxu0 0.0
    %217 = vmatpush2.msra.mxu0 0.0
    %218 = vmatprep.subr.mxu0 0.0
    %219 = vmatpush2.msra.mxu0 0.0
    %220 = vmatprep.subr.mxu0 0.0
    %221 = vmatpush2.msra.mxu0 0.0
    %222 = vmatprep.mubr.f32.mxu0 0.0
    %223 = vmatmul.mubr.f32.gmra.mxu0 %v156
    %v224 = vpop.f32.mrf.mxu0
    %v225 = vadd.f32 %v124, %v224
    %v226 = vpop.f32.mrf.mxu0
    %227 = vdwg.mxu0
    %v236 = vrot.slane %v113, 7
    %v237 = vsel %vm135, %v236, %v112
    %v238 = vrot.slane %v114, 6
    %v239 = vsel %vm138, %v238, %v237
    %v240 = vrot.slane %v115, 5
    %v241 = vsel %vm141, %v240, %v239
    %v242 = vrot.slane %v116, 4
    %v243 = vsel %vm144, %v242, %v241
    %v244 = vrot.slane %v117, 3
    %v245 = vsel %vm147, %v244, %v243
    %v246 = vrot.slane %v118, 2
    %v247 = vsel %vm150, %v246, %v245
    %v248 = vrot.slane %v119, 1
    %v249 = vsel %vm153, %v248, %v247
    %v250 = vsel %vm155, %v249, 0
    %252 = vmatprep.subr.mxu0 0.0
    %253 = vmatpush1.msra.mxu0 0.0
    %254 = vmatprep.subr.mxu0 0.0
    %255 = vmatpush1.msra.mxu0 0.0
    %256 = vmatprep.subr.mxu0 0.0
    %257 = vmatpush1.msra.mxu0 0.0
    %258 = vmatprep.subr.mxu0 0.0
    %259 = vmatpush1.msra.mxu0 0.0
    %260 = vmatprep.subr.mxu0 0.0
    %261 = vmatpush1.msra.mxu0 0.0
    %262 = vmatprep.subr.mxu0 0.0
    %263 = vmatpush1.msra.mxu0 0.0
    %264 = vmatprep.subr.mxu0 0.0
    %265 = vmatpush1.msra.mxu0 0.0
    %266 = vmatprep.subr.mxu0 0.0
    %267 = vmatpush1.msra.mxu0 0.0
    %268 = vmatprep.subr.mxu0 0.0
    %269 = vmatpush1.msra.mxu0 0.0
    %270 = vmatprep.subr.mxu0 0.0
    %271 = vmatpush1.msra.mxu0 0.0
    %272 = vmatprep.subr.mxu0 0.0
    %273 = vmatpush1.msra.mxu0 0.0
    %274 = vmatprep.subr.mxu0 0.0
    %275 = vmatpush1.msra.mxu0 0.0
    %276 = vmatprep.subr.mxu0 0.0
    %277 = vmatpush1.msra.mxu0 %v93
    %278 = vmatprep.subr.mxu0 0.0
    %279 = vmatpush1.msra.mxu0 %v92
    %280 = vmatprep.subr.mxu0 0.0
    %281 = vmatpush1.msra.mxu0 %v91
    %282 = vmatprep.subr.mxu0 0.0
    %283 = vmatpush1.msra.mxu0 %v90
    %284 = vmatprep.subr.mxu0 0.0
    %285 = vmatpush2.msra.mxu0 0.0
    %286 = vmatprep.subr.mxu0 0.0
    %287 = vmatpush2.msra.mxu0 0.0
    %288 = vmatprep.subr.mxu0 0.0
    %289 = vmatpush2.msra.mxu0 0.0
    %290 = vmatprep.subr.mxu0 0.0
    %291 = vmatpush2.msra.mxu0 0.0
    %292 = vmatprep.subr.mxu0 0.0
    %293 = vmatpush2.msra.mxu0 0.0
    %294 = vmatprep.subr.mxu0 0.0
    %295 = vmatpush2.msra.mxu0 0.0
    %296 = vmatprep.subr.mxu0 0.0
    %297 = vmatpush2.msra.mxu0 0.0
    %298 = vmatprep.subr.mxu0 0.0
    %299 = vmatpush2.msra.mxu0 0.0
    %300 = vmatprep.subr.mxu0 0.0
    %301 = vmatpush2.msra.mxu0 0.0
    %302 = vmatprep.subr.mxu0 0.0
    %303 = vmatpush2.msra.mxu0 0.0
    %304 = vmatprep.subr.mxu0 0.0
    %305 = vmatpush2.msra.mxu0 0.0
    %306 = vmatprep.subr.mxu0 0.0
    %307 = vmatpush2.msra.mxu0 0.0
    %308 = vmatprep.subr.mxu0 0.0
    %309 = vmatpush2.msra.mxu0 0.0
    %310 = vmatprep.subr.mxu0 0.0
    %311 = vmatpush2.msra.mxu0 0.0
    %312 = vmatprep.subr.mxu0 0.0
    %313 = vmatpush2.msra.mxu0 0.0
    %314 = vmatprep.subr.mxu0 0.0
    %315 = vmatpush2.msra.mxu0 0.0
    %316 = vmatprep.mubr.f32.mxu0 0.0
    %317 = vmatmul.mubr.f32.gmra.mxu0 %v250
    %v318 = vpop.f32.mrf.mxu0
    %v319 = vadd.f32 %v124, %v318
    %v320 = vpop.f32.mrf.mxu0
    %321 = vdwg.mxu0
    %323 = vrot.lane.b32.xlu0 %v225, 96
    %v324 = vpop.permute.xlu0 %323
    %vm325 = vcmask 64512
    %v326 = vsel %vm325, %v225, 0
    %v328 = vsel %vm325, %v324, 0
    %330 = vmatprep.subr.mxu0 0.0
    %331 = vmatpush1.xpose.msra.mxu0 0.0
    %332 = vmatprep.subr.mxu0 0.0
    %333 = vmatpush1.xpose.msra.mxu0 0.0
    %334 = vmatprep.subr.mxu0 0.0
    %335 = vmatpush1.xpose.msra.mxu0 0.0
    %336 = vmatprep.subr.mxu0 0.0
    %337 = vmatpush1.xpose.msra.mxu0 0.0
    %338 = vmatprep.subr.mxu0 0.0
    %339 = vmatpush1.xpose.msra.mxu0 0.0
    %340 = vmatprep.subr.mxu0 0.0
    %341 = vmatpush1.xpose.msra.mxu0 0.0
    %342 = vmatprep.subr.mxu0 0.0
    %343 = vmatpush1.xpose.msra.mxu0 0.0
    %344 = vmatprep.subr.mxu0 0.0
    %345 = vmatpush1.xpose.msra.mxu0 0.0
    %346 = vmatprep.subr.mxu0 0.0
    %347 = vmatpush1.xpose.msra.mxu0 0.0
    %348 = vmatprep.subr.mxu0 0.0
    %349 = vmatpush1.xpose.msra.mxu0 0.0
    %350 = vmatprep.subr.mxu0 0.0
    %351 = vmatpush1.xpose.msra.mxu0 0.0
    %352 = vmatprep.subr.mxu0 0.0
    %353 = vmatpush1.xpose.msra.mxu0 0.0
    %354 = vmatprep.subr.mxu0 0.0
    %355 = vmatpush1.xpose.msra.mxu0 0.0
    %356 = vmatprep.subr.mxu0 0.0
    %357 = vmatpush1.xpose.msra.mxu0 0.0
    %358 = vmatprep.subr.mxu0 0.0
    %359 = vmatpush1.xpose.msra.mxu0 0.0
    %360 = vmatprep.subr.mxu0 0.0
    %361 = vmatpush1.xpose.msra.mxu0 %v328
    %362 = vmatprep.subr.mxu0 0.0
    %363 = vmatpush2.xpose.msra.mxu0 0.0
    %364 = vmatprep.subr.mxu0 0.0
    %365 = vmatpush2.xpose.msra.mxu0 0.0
    %366 = vmatprep.subr.mxu0 0.0
    %367 = vmatpush2.xpose.msra.mxu0 0.0
    %368 = vmatprep.subr.mxu0 0.0
    %369 = vmatpush2.xpose.msra.mxu0 0.0
    %370 = vmatprep.subr.mxu0 0.0
    %371 = vmatpush2.xpose.msra.mxu0 0.0
    %372 = vmatprep.subr.mxu0 0.0
    %373 = vmatpush2.xpose.msra.mxu0 0.0
    %374 = vmatprep.subr.mxu0 0.0
    %375 = vmatpush2.xpose.msra.mxu0 0.0
    %376 = vmatprep.subr.mxu0 0.0
    %377 = vmatpush2.xpose.msra.mxu0 0.0
    %378 = vmatprep.subr.mxu0 0.0
    %379 = vmatpush2.xpose.msra.mxu0 0.0
    %380 = vmatprep.subr.mxu0 0.0
    %381 = vmatpush2.xpose.msra.mxu0 0.0
    %382 = vmatprep.subr.mxu0 0.0
    %383 = vmatpush2.xpose.msra.mxu0 0.0
    %384 = vmatprep.subr.mxu0 0.0
    %385 = vmatpush2.xpose.msra.mxu0 0.0
    %386 = vmatprep.subr.mxu0 0.0
    %387 = vmatpush2.xpose.msra.mxu0 0.0
    %388 = vmatprep.subr.mxu0 0.0
    %389 = vmatpush2.xpose.msra.mxu0 0.0
    %390 = vmatprep.subr.mxu0 0.0
    %391 = vmatpush2.xpose.msra.mxu0 0.0
    %392 = vmatprep.subr.mxu0 0.0
    %393 = vmatpush2.xpose.msra.mxu0 0.0
    %394 = vmatprep.mubr.f32.mxu0 0.0
    %395 = vmatmul.mubr.f32.gmra.mxu0 %v326
    %v396 = vpop.f32.mrf.mxu0
    %v397 = vadd.f32 0.0, %v396
    %v398 = vpop.f32.mrf.mxu0
    %399 = vdwg.mxu0
    %400 = vrot.lane.b32.xlu0 %v225, 120
    %v401 = vpop.permute.xlu0 %400
    %402 = vrot.lane.b32.xlu0 %v225, 88
    %v403 = vpop.permute.xlu0 %402
    %v404 = vsel %vm325, %v401, 0
    %v406 = vsel %vm325, %v403, 0
    %408 = vmatprep.subr.mxu0 0.0
    %409 = vmatpush1.xpose.msra.mxu0 0.0
    %410 = vmatprep.subr.mxu0 0.0
    %411 = vmatpush1.xpose.msra.mxu0 0.0
    %412 = vmatprep.subr.mxu0 0.0
    %413 = vmatpush1.xpose.msra.mxu0 0.0
    %414 = vmatprep.subr.mxu0 0.0
    %415 = vmatpush1.xpose.msra.mxu0 0.0
    %416 = vmatprep.subr.mxu0 0.0
    %417 = vmatpush1.xpose.msra.mxu0 0.0
    %418 = vmatprep.subr.mxu0 0.0
    %419 = vmatpush1.xpose.msra.mxu0 0.0
    %420 = vmatprep.subr.mxu0 0.0
    %421 = vmatpush1.xpose.msra.mxu0 0.0
    %422 = vmatprep.subr.mxu0 0.0
    %423 = vmatpush1.xpose.msra.mxu0 0.0
    %424 = vmatprep.subr.mxu0 0.0
    %425 = vmatpush1.xpose.msra.mxu0 0.0
    %426 = vmatprep.subr.mxu0 0.0
    %427 = vmatpush1.xpose.msra.mxu0 0.0
    %428 = vmatprep.subr.mxu0 0.0
    %429 = vmatpush1.xpose.msra.mxu0 0.0
    %430 = vmatprep.subr.mxu0 0.0
    %431 = vmatpush1.xpose.msra.mxu0 0.0
    %432 = vmatprep.subr.mxu0 0.0
    %433 = vmatpush1.xpose.msra.mxu0 0.0
    %434 = vmatprep.subr.mxu0 0.0
    %435 = vmatpush1.xpose.msra.mxu0 0.0
    %436 = vmatprep.subr.mxu0 0.0
    %437 = vmatpush1.xpose.msra.mxu0 0.0
    %438 = vmatprep.subr.mxu0 0.0
    %439 = vmatpush1.xpose.msra.mxu0 %v406
    %440 = vmatprep.subr.mxu0 0.0
    %441 = vmatpush2.xpose.msra.mxu0 0.0
    %442 = vmatprep.subr.mxu0 0.0
    %443 = vmatpush2.xpose.msra.mxu0 0.0
    %444 = vmatprep.subr.mxu0 0.0
    %445 = vmatpush2.xpose.msra.mxu0 0.0
    %446 = vmatprep.subr.mxu0 0.0
    %447 = vmatpush2.xpose.msra.mxu0 0.0
    %448 = vmatprep.subr.mxu0 0.0
    %449 = vmatpush2.xpose.msra.mxu0 0.0
    %450 = vmatprep.subr.mxu0 0.0
    %451 = vmatpush2.xpose.msra.mxu0 0.0
    %452 = vmatprep.subr.mxu0 0.0
    %453 = vmatpush2.xpose.msra.mxu0 0.0
    %454 = vmatprep.subr.mxu0 0.0
    %455 = vmatpush2.xpose.msra.mxu0 0.0
    %456 = vmatprep.subr.mxu0 0.0
    %457 = vmatpush2.xpose.msra.mxu0 0.0
    %458 = vmatprep.subr.mxu0 0.0
    %459 = vmatpush2.xpose.msra.mxu0 0.0
    %460 = vmatprep.subr.mxu0 0.0
    %461 = vmatpush2.xpose.msra.mxu0 0.0
    %462 = vmatprep.subr.mxu0 0.0
    %463 = vmatpush2.xpose.msra.mxu0 0.0
    %464 = vmatprep.subr.mxu0 0.0
    %465 = vmatpush2.xpose.msra.mxu0 0.0
    %466 = vmatprep.subr.mxu0 0.0
    %467 = vmatpush2.xpose.msra.mxu0 0.0
    %468 = vmatprep.subr.mxu0 0.0
    %469 = vmatpush2.xpose.msra.mxu0 0.0
    %470 = vmatprep.subr.mxu0 0.0
    %471 = vmatpush2.xpose.msra.mxu0 0.0
    %472 = vmatprep.mubr.f32.mxu0 0.0
    %473 = vmatmul.mubr.f32.gmra.mxu0 %v404
    %v474 = vpop.f32.mrf.mxu0
    %v475 = vadd.f32 0.0, %v474
    %v476 = vpop.f32.mrf.mxu0
    %477 = vdwg.mxu0
    %478 = vrot.lane.b32.xlu0 %v225, 112
    %v479 = vpop.permute.xlu0 %478
    %480 = vrot.lane.b32.xlu0 %v225, 80
    %v481 = vpop.permute.xlu0 %480
    %v482 = vsel %vm325, %v479, 0
    %v484 = vsel %vm325, %v481, 0
    %486 = vmatprep.subr.mxu0 0.0
    %487 = vmatpush1.xpose.msra.mxu0 0.0
    %488 = vmatprep.subr.mxu0 0.0
    %489 = vmatpush1.xpose.msra.mxu0 0.0
    %490 = vmatprep.subr.mxu0 0.0
    %491 = vmatpush1.xpose.msra.mxu0 0.0
    %492 = vmatprep.subr.mxu0 0.0
    %493 = vmatpush1.xpose.msra.mxu0 0.0
    %494 = vmatprep.subr.mxu0 0.0
    %495 = vmatpush1.xpose.msra.mxu0 0.0
    %496 = vmatprep.subr.mxu0 0.0
    %497 = vmatpush1.xpose.msra.mxu0 0.0
    %498 = vmatprep.subr.mxu0 0.0
    %499 = vmatpush1.xpose.msra.mxu0 0.0
    %500 = vmatprep.subr.mxu0 0.0
    %501 = vmatpush1.xpose.msra.mxu0 0.0
    %502 = vmatprep.subr.mxu0 0.0
    %503 = vmatpush1.xpose.msra.mxu0 0.0
    %504 = vmatprep.subr.mxu0 0.0
    %505 = vmatpush1.xpose.msra.mxu0 0.0
    %506 = vmatprep.subr.mxu0 0.0
    %507 = vmatpush1.xpose.msra.mxu0 0.0
    %508 = vmatprep.subr.mxu0 0.0
    %509 = vmatpush1.xpose.msra.mxu0 0.0
    %510 = vmatprep.subr.mxu0 0.0
    %511 = vmatpush1.xpose.msra.mxu0 0.0
    %512 = vmatprep.subr.mxu0 0.0
    %513 = vmatpush1.xpose.msra.mxu0 0.0
    %514 = vmatprep.subr.mxu0 0.0
    %515 = vmatpush1.xpose.msra.mxu0 0.0
    %516 = vmatprep.subr.mxu0 0.0
    %517 = vmatpush1.xpose.msra.mxu0 %v484
    %518 = vmatprep.subr.mxu0 0.0
    %519 = vmatpush2.xpose.msra.mxu0 0.0
    %520 = vmatprep.subr.mxu0 0.0
    %521 = vmatpush2.xpose.msra.mxu0 0.0
    %522 = vmatprep.subr.mxu0 0.0
    %523 = vmatpush2.xpose.msra.mxu0 0.0
    %524 = vmatprep.subr.mxu0 0.0
    %525 = vmatpush2.xpose.msra.mxu0 0.0
    %526 = vmatprep.subr.mxu0 0.0
    %527 = vmatpush2.xpose.msra.mxu0 0.0
    %528 = vmatprep.subr.mxu0 0.0
    %529 = vmatpush2.xpose.msra.mxu0 0.0
    %530 = vmatprep.subr.mxu0 0.0
    %531 = vmatpush2.xpose.msra.mxu0 0.0
    %532 = vmatprep.subr.mxu0 0.0
    %533 = vmatpush2.xpose.msra.mxu0 0.0
    %534 = vmatprep.subr.mxu0 0.0
    %535 = vmatpush2.xpose.msra.mxu0 0.0
    %536 = vmatprep.subr.mxu0 0.0
    %537 = vmatpush2.xpose.msra.mxu0 0.0
    %538 = vmatprep.subr.mxu0 0.0
    %539 = vmatpush2.xpose.msra.mxu0 0.0
    %540 = vmatprep.subr.mxu0 0.0
    %541 = vmatpush2.xpose.msra.mxu0 0.0
    %542 = vmatprep.subr.mxu0 0.0
    %543 = vmatpush2.xpose.msra.mxu0 0.0
    %544 = vmatprep.subr.mxu0 0.0
    %545 = vmatpush2.xpose.msra.mxu0 0.0
    %546 = vmatprep.subr.mxu0 0.0
    %547 = vmatpush2.xpose.msra.mxu0 0.0
    %548 = vmatprep.subr.mxu0 0.0
    %549 = vmatpush2.xpose.msra.mxu0 0.0
    %550 = vmatprep.mubr.f32.mxu0 0.0
    %551 = vmatmul.mubr.f32.gmra.mxu0 %v482
    %v552 = vpop.f32.mrf.mxu0
    %v553 = vadd.f32 0.0, %v552
    %v554 = vpop.f32.mrf.mxu0
    %555 = vdwg.mxu0
    %556 = vrot.lane.b32.xlu0 %v225, 104
    %v557 = vpop.permute.xlu0 %556
    %558 = vrot.lane.b32.xlu0 %v225, 72
    %v559 = vpop.permute.xlu0 %558
    %v560 = vsel %vm325, %v557, 0
    %v562 = vsel %vm325, %v559, 0
    %564 = vmatprep.subr.mxu0 0.0
    %565 = vmatpush1.xpose.msra.mxu0 0.0
    %566 = vmatprep.subr.mxu0 0.0
    %567 = vmatpush1.xpose.msra.mxu0 0.0
    %568 = vmatprep.subr.mxu0 0.0
    %569 = vmatpush1.xpose.msra.mxu0 0.0
    %570 = vmatprep.subr.mxu0 0.0
    %571 = vmatpush1.xpose.msra.mxu0 0.0
    %572 = vmatprep.subr.mxu0 0.0
    %573 = vmatpush1.xpose.msra.mxu0 0.0
    %574 = vmatprep.subr.mxu0 0.0
    %575 = vmatpush1.xpose.msra.mxu0 0.0
    %576 = vmatprep.subr.mxu0 0.0
    %577 = vmatpush1.xpose.msra.mxu0 0.0
    %578 = vmatprep.subr.mxu0 0.0
    %579 = vmatpush1.xpose.msra.mxu0 0.0
    %580 = vmatprep.subr.mxu0 0.0
    %581 = vmatpush1.xpose.msra.mxu0 0.0
    %582 = vmatprep.subr.mxu0 0.0
    %583 = vmatpush1.xpose.msra.mxu0 0.0
    %584 = vmatprep.subr.mxu0 0.0
    %585 = vmatpush1.xpose.msra.mxu0 0.0
    %586 = vmatprep.subr.mxu0 0.0
    %587 = vmatpush1.xpose.msra.mxu0 0.0
    %588 = vmatprep.subr.mxu0 0.0
    %589 = vmatpush1.xpose.msra.mxu0 0.0
    %590 = vmatprep.subr.mxu0 0.0
    %591 = vmatpush1.xpose.msra.mxu0 0.0
    %592 = vmatprep.subr.mxu0 0.0
    %593 = vmatpush1.xpose.msra.mxu0 0.0
    %594 = vmatprep.subr.mxu0 0.0
    %595 = vmatpush1.xpose.msra.mxu0 %v562
    %596 = vmatprep.subr.mxu0 0.0
    %597 = vmatpush2.xpose.msra.mxu0 0.0
    %598 = vmatprep.subr.mxu0 0.0
    %599 = vmatpush2.xpose.msra.mxu0 0.0
    %600 = vmatprep.subr.mxu0 0.0
    %601 = vmatpush2.xpose.msra.mxu0 0.0
    %602 = vmatprep.subr.mxu0 0.0
    %603 = vmatpush2.xpose.msra.mxu0 0.0
    %604 = vmatprep.subr.mxu0 0.0
    %605 = vmatpush2.xpose.msra.mxu0 0.0
    %606 = vmatprep.subr.mxu0 0.0
    %607 = vmatpush2.xpose.msra.mxu0 0.0
    %608 = vmatprep.subr.mxu0 0.0
    %609 = vmatpush2.xpose.msra.mxu0 0.0
    %610 = vmatprep.subr.mxu0 0.0
    %611 = vmatpush2.xpose.msra.mxu0 0.0
    %612 = vmatprep.subr.mxu0 0.0
    %613 = vmatpush2.xpose.msra.mxu0 0.0
    %614 = vmatprep.subr.mxu0 0.0
    %615 = vmatpush2.xpose.msra.mxu0 0.0
    %616 = vmatprep.subr.mxu0 0.0
    %617 = vmatpush2.xpose.msra.mxu0 0.0
    %618 = vmatprep.subr.mxu0 0.0
    %619 = vmatpush2.xpose.msra.mxu0 0.0
    %620 = vmatprep.subr.mxu0 0.0
    %621 = vmatpush2.xpose.msra.mxu0 0.0
    %622 = vmatprep.subr.mxu0 0.0
    %623 = vmatpush2.xpose.msra.mxu0 0.0
    %624 = vmatprep.subr.mxu0 0.0
    %625 = vmatpush2.xpose.msra.mxu0 0.0
    %626 = vmatprep.subr.mxu0 0.0
    %627 = vmatpush2.xpose.msra.mxu0 0.0
    %628 = vmatprep.mubr.f32.mxu0 0.0
    %629 = vmatmul.mubr.f32.gmra.mxu0 %v560
    %v630 = vpop.f32.mrf.mxu0
    %v631 = vadd.f32 0.0, %v630
    %v632 = vpop.f32.mrf.mxu0
    %633 = vdwg.mxu0
    %635 = vrot.lane.b32.xlu0 %v319, 96
    %v636 = vpop.permute.xlu0 %635
    %v637 = vsel %vm325, %v319, 0
    %v639 = vsel %vm325, %v636, 0
    %641 = vmatprep.subr.mxu0 0.0
    %642 = vmatpush1.xpose.msra.mxu0 0.0
    %643 = vmatprep.subr.mxu0 0.0
    %644 = vmatpush1.xpose.msra.mxu0 0.0
    %645 = vmatprep.subr.mxu0 0.0
    %646 = vmatpush1.xpose.msra.mxu0 0.0
    %647 = vmatprep.subr.mxu0 0.0
    %648 = vmatpush1.xpose.msra.mxu0 0.0
    %649 = vmatprep.subr.mxu0 0.0
    %650 = vmatpush1.xpose.msra.mxu0 0.0
    %651 = vmatprep.subr.mxu0 0.0
    %652 = vmatpush1.xpose.msra.mxu0 0.0
    %653 = vmatprep.subr.mxu0 0.0
    %654 = vmatpush1.xpose.msra.mxu0 0.0
    %655 = vmatprep.subr.mxu0 0.0
    %656 = vmatpush1.xpose.msra.mxu0 0.0
    %657 = vmatprep.subr.mxu0 0.0
    %658 = vmatpush1.xpose.msra.mxu0 0.0
    %659 = vmatprep.subr.mxu0 0.0
    %660 = vmatpush1.xpose.msra.mxu0 0.0
    %661 = vmatprep.subr.mxu0 0.0
    %662 = vmatpush1.xpose.msra.mxu0 0.0
    %663 = vmatprep.subr.mxu0 0.0
    %664 = vmatpush1.xpose.msra.mxu0 0.0
    %665 = vmatprep.subr.mxu0 0.0
    %666 = vmatpush1.xpose.msra.mxu0 0.0
    %667 = vmatprep.subr.mxu0 0.0
    %668 = vmatpush1.xpose.msra.mxu0 0.0
    %669 = vmatprep.subr.mxu0 0.0
    %670 = vmatpush1.xpose.msra.mxu0 0.0
    %671 = vmatprep.subr.mxu0 0.0
    %672 = vmatpush1.xpose.msra.mxu0 %v639
    %673 = vmatprep.subr.mxu0 0.0
    %674 = vmatpush2.xpose.msra.mxu0 0.0
    %675 = vmatprep.subr.mxu0 0.0
    %676 = vmatpush2.xpose.msra.mxu0 0.0
    %677 = vmatprep.subr.mxu0 0.0
    %678 = vmatpush2.xpose.msra.mxu0 0.0
    %679 = vmatprep.subr.mxu0 0.0
    %680 = vmatpush2.xpose.msra.mxu0 0.0
    %681 = vmatprep.subr.mxu0 0.0
    %682 = vmatpush2.xpose.msra.mxu0 0.0
    %683 = vmatprep.subr.mxu0 0.0
    %684 = vmatpush2.xpose.msra.mxu0 0.0
    %685 = vmatprep.subr.mxu0 0.0
    %686 = vmatpush2.xpose.msra.mxu0 0.0
    %687 = vmatprep.subr.mxu0 0.0
    %688 = vmatpush2.xpose.msra.mxu0 0.0
    %689 = vmatprep.subr.mxu0 0.0
    %690 = vmatpush2.xpose.msra.mxu0 0.0
    %691 = vmatprep.subr.mxu0 0.0
    %692 = vmatpush2.xpose.msra.mxu0 0.0
    %693 = vmatprep.subr.mxu0 0.0
    %694 = vmatpush2.xpose.msra.mxu0 0.0
    %695 = vmatprep.subr.mxu0 0.0
    %696 = vmatpush2.xpose.msra.mxu0 0.0
    %697 = vmatprep.subr.mxu0 0.0
    %698 = vmatpush2.xpose.msra.mxu0 0.0
    %699 = vmatprep.subr.mxu0 0.0
    %700 = vmatpush2.xpose.msra.mxu0 0.0
    %701 = vmatprep.subr.mxu0 0.0
    %702 = vmatpush2.xpose.msra.mxu0 0.0
    %703 = vmatprep.subr.mxu0 0.0
    %704 = vmatpush2.xpose.msra.mxu0 0.0
    %705 = vmatprep.mubr.f32.mxu0 0.0
    %706 = vmatmul.mubr.f32.gmra.mxu0 %v637
    %v707 = vpop.f32.mrf.mxu0
    %v708 = vadd.f32 0.0, %v707
    %v709 = vpop.f32.mrf.mxu0
    %710 = vdwg.mxu0
    %711 = vrot.lane.b32.xlu0 %v319, 120
    %v712 = vpop.permute.xlu0 %711
    %713 = vrot.lane.b32.xlu0 %v319, 88
    %v714 = vpop.permute.xlu0 %713
    %v715 = vsel %vm325, %v712, 0
    %v717 = vsel %vm325, %v714, 0
    %719 = vmatprep.subr.mxu0 0.0
    %720 = vmatpush1.xpose.msra.mxu0 0.0
    %721 = vmatprep.subr.mxu0 0.0
    %722 = vmatpush1.xpose.msra.mxu0 0.0
    %723 = vmatprep.subr.mxu0 0.0
    %724 = vmatpush1.xpose.msra.mxu0 0.0
    %725 = vmatprep.subr.mxu0 0.0
    %726 = vmatpush1.xpose.msra.mxu0 0.0
    %727 = vmatprep.subr.mxu0 0.0
    %728 = vmatpush1.xpose.msra.mxu0 0.0
    %729 = vmatprep.subr.mxu0 0.0
    %730 = vmatpush1.xpose.msra.mxu0 0.0
    %731 = vmatprep.subr.mxu0 0.0
    %732 = vmatpush1.xpose.msra.mxu0 0.0
    %733 = vmatprep.subr.mxu0 0.0
    %734 = vmatpush1.xpose.msra.mxu0 0.0
    %735 = vmatprep.subr.mxu0 0.0
    %736 = vmatpush1.xpose.msra.mxu0 0.0
    %737 = vmatprep.subr.mxu0 0.0
    %738 = vmatpush1.xpose.msra.mxu0 0.0
    %739 = vmatprep.subr.mxu0 0.0
    %740 = vmatpush1.xpose.msra.mxu0 0.0
    %741 = vmatprep.subr.mxu0 0.0
    %742 = vmatpush1.xpose.msra.mxu0 0.0
    %743 = vmatprep.subr.mxu0 0.0
    %744 = vmatpush1.xpose.msra.mxu0 0.0
    %745 = vmatprep.subr.mxu0 0.0
    %746 = vmatpush1.xpose.msra.mxu0 0.0
    %747 = vmatprep.subr.mxu0 0.0
    %748 = vmatpush1.xpose.msra.mxu0 0.0
    %749 = vmatprep.subr.mxu0 0.0
    %750 = vmatpush1.xpose.msra.mxu0 %v717
    %751 = vmatprep.subr.mxu0 0.0
    %752 = vmatpush2.xpose.msra.mxu0 0.0
    %753 = vmatprep.subr.mxu0 0.0
    %754 = vmatpush2.xpose.msra.mxu0 0.0
    %755 = vmatprep.subr.mxu0 0.0
    %756 = vmatpush2.xpose.msra.mxu0 0.0
    %757 = vmatprep.subr.mxu0 0.0
    %758 = vmatpush2.xpose.msra.mxu0 0.0
    %759 = vmatprep.subr.mxu0 0.0
    %760 = vmatpush2.xpose.msra.mxu0 0.0
    %761 = vmatprep.subr.mxu0 0.0
    %762 = vmatpush2.xpose.msra.mxu0 0.0
    %763 = vmatprep.subr.mxu0 0.0
    %764 = vmatpush2.xpose.msra.mxu0 0.0
    %765 = vmatprep.subr.mxu0 0.0
    %766 = vmatpush2.xpose.msra.mxu0 0.0
    %767 = vmatprep.subr.mxu0 0.0
    %768 = vmatpush2.xpose.msra.mxu0 0.0
    %769 = vmatprep.subr.mxu0 0.0
    %770 = vmatpush2.xpose.msra.mxu0 0.0
    %771 = vmatprep.subr.mxu0 0.0
    %772 = vmatpush2.xpose.msra.mxu0 0.0
    %773 = vmatprep.subr.mxu0 0.0
    %774 = vmatpush2.xpose.msra.mxu0 0.0
    %775 = vmatprep.subr.mxu0 0.0
    %776 = vmatpush2.xpose.msra.mxu0 0.0
    %777 = vmatprep.subr.mxu0 0.0
    %778 = vmatpush2.xpose.msra.mxu0 0.0
    %779 = vmatprep.subr.mxu0 0.0
    %780 = vmatpush2.xpose.msra.mxu0 0.0
    %781 = vmatprep.subr.mxu0 0.0
    %782 = vmatpush2.xpose.msra.mxu0 0.0
    %783 = vmatprep.mubr.f32.mxu0 0.0
    %784 = vmatmul.mubr.f32.gmra.mxu0 %v715
    %v785 = vpop.f32.mrf.mxu0
    %v786 = vadd.f32 0.0, %v785
    %v787 = vpop.f32.mrf.mxu0
    %788 = vdwg.mxu0
    %789 = vrot.lane.b32.xlu0 %v319, 112
    %v790 = vpop.permute.xlu0 %789
    %791 = vrot.lane.b32.xlu0 %v319, 80
    %v792 = vpop.permute.xlu0 %791
    %v793 = vsel %vm325, %v790, 0
    %v795 = vsel %vm325, %v792, 0
    %797 = vmatprep.subr.mxu0 0.0
    %798 = vmatpush1.xpose.msra.mxu0 0.0
    %799 = vmatprep.subr.mxu0 0.0
    %800 = vmatpush1.xpose.msra.mxu0 0.0
    %801 = vmatprep.subr.mxu0 0.0
    %802 = vmatpush1.xpose.msra.mxu0 0.0
    %803 = vmatprep.subr.mxu0 0.0
    %804 = vmatpush1.xpose.msra.mxu0 0.0
    %805 = vmatprep.subr.mxu0 0.0
    %806 = vmatpush1.xpose.msra.mxu0 0.0
    %807 = vmatprep.subr.mxu0 0.0
    %808 = vmatpush1.xpose.msra.mxu0 0.0
    %809 = vmatprep.subr.mxu0 0.0
    %810 = vmatpush1.xpose.msra.mxu0 0.0
    %811 = vmatprep.subr.mxu0 0.0
    %812 = vmatpush1.xpose.msra.mxu0 0.0
    %813 = vmatprep.subr.mxu0 0.0
    %814 = vmatpush1.xpose.msra.mxu0 0.0
    %815 = vmatprep.subr.mxu0 0.0
    %816 = vmatpush1.xpose.msra.mxu0 0.0
    %817 = vmatprep.subr.mxu0 0.0
    %818 = vmatpush1.xpose.msra.mxu0 0.0
    %819 = vmatprep.subr.mxu0 0.0
    %820 = vmatpush1.xpose.msra.mxu0 0.0
    %821 = vmatprep.subr.mxu0 0.0
    %822 = vmatpush1.xpose.msra.mxu0 0.0
    %823 = vmatprep.subr.mxu0 0.0
    %824 = vmatpush1.xpose.msra.mxu0 0.0
    %825 = vmatprep.subr.mxu0 0.0
    %826 = vmatpush1.xpose.msra.mxu0 0.0
    %827 = vmatprep.subr.mxu0 0.0
    %828 = vmatpush1.xpose.msra.mxu0 %v795
    %829 = vmatprep.subr.mxu0 0.0
    %830 = vmatpush2.xpose.msra.mxu0 0.0
    %831 = vmatprep.subr.mxu0 0.0
    %832 = vmatpush2.xpose.msra.mxu0 0.0
    %833 = vmatprep.subr.mxu0 0.0
    %834 = vmatpush2.xpose.msra.mxu0 0.0
    %835 = vmatprep.subr.mxu0 0.0
    %836 = vmatpush2.xpose.msra.mxu0 0.0
    %837 = vmatprep.subr.mxu0 0.0
    %838 = vmatpush2.xpose.msra.mxu0 0.0
    %839 = vmatprep.subr.mxu0 0.0
    %840 = vmatpush2.xpose.msra.mxu0 0.0
    %841 = vmatprep.subr.mxu0 0.0
    %842 = vmatpush2.xpose.msra.mxu0 0.0
    %843 = vmatprep.subr.mxu0 0.0
    %844 = vmatpush2.xpose.msra.mxu0 0.0
    %845 = vmatprep.subr.mxu0 0.0
    %846 = vmatpush2.xpose.msra.mxu0 0.0
    %847 = vmatprep.subr.mxu0 0.0
    %848 = vmatpush2.xpose.msra.mxu0 0.0
    %849 = vmatprep.subr.mxu0 0.0
    %850 = vmatpush2.xpose.msra.mxu0 0.0
    %851 = vmatprep.subr.mxu0 0.0
    %852 = vmatpush2.xpose.msra.mxu0 0.0
    %853 = vmatprep.subr.mxu0 0.0
    %854 = vmatpush2.xpose.msra.mxu0 0.0
    %855 = vmatprep.subr.mxu0 0.0
    %856 = vmatpush2.xpose.msra.mxu0 0.0
    %857 = vmatprep.subr.mxu0 0.0
    %858 = vmatpush2.xpose.msra.mxu0 0.0
    %859 = vmatprep.subr.mxu0 0.0
    %860 = vmatpush2.xpose.msra.mxu0 0.0
    %861 = vmatprep.mubr.f32.mxu0 0.0
    %862 = vmatmul.mubr.f32.gmra.mxu0 %v793
    %v863 = vpop.f32.mrf.mxu0
    %v864 = vadd.f32 0.0, %v863
    %v865 = vpop.f32.mrf.mxu0
    %866 = vdwg.mxu0
    %867 = vrot.lane.b32.xlu0 %v319, 104
    %v868 = vpop.permute.xlu0 %867
    %869 = vrot.lane.b32.xlu0 %v319, 72
    %v870 = vpop.permute.xlu0 %869
    %v871 = vsel %vm325, %v868, 0
    %v873 = vsel %vm325, %v870, 0
    %875 = vmatprep.subr.mxu0 0.0
    %876 = vmatpush1.xpose.msra.mxu0 0.0
    %877 = vmatprep.subr.mxu0 0.0
    %878 = vmatpush1.xpose.msra.mxu0 0.0
    %879 = vmatprep.subr.mxu0 0.0
    %880 = vmatpush1.xpose.msra.mxu0 0.0
    %881 = vmatprep.subr.mxu0 0.0
    %882 = vmatpush1.xpose.msra.mxu0 0.0
    %883 = vmatprep.subr.mxu0 0.0
    %884 = vmatpush1.xpose.msra.mxu0 0.0
    %885 = vmatprep.subr.mxu0 0.0
    %886 = vmatpush1.xpose.msra.mxu0 0.0
    %887 = vmatprep.subr.mxu0 0.0
    %888 = vmatpush1.xpose.msra.mxu0 0.0
    %889 = vmatprep.subr.mxu0 0.0
    %890 = vmatpush1.xpose.msra.mxu0 0.0
    %891 = vmatprep.subr.mxu0 0.0
    %892 = vmatpush1.xpose.msra.mxu0 0.0
    %893 = vmatprep.subr.mxu0 0.0
    %894 = vmatpush1.xpose.msra.mxu0 0.0
    %895 = vmatprep.subr.mxu0 0.0
    %896 = vmatpush1.xpose.msra.mxu0 0.0
    %897 = vmatprep.subr.mxu0 0.0
    %898 = vmatpush1.xpose.msra.mxu0 0.0
    %899 = vmatprep.subr.mxu0 0.0
    %900 = vmatpush1.xpose.msra.mxu0 0.0
    %901 = vmatprep.subr.mxu0 0.0
    %902 = vmatpush1.xpose.msra.mxu0 0.0
    %903 = vmatprep.subr.mxu0 0.0
    %904 = vmatpush1.xpose.msra.mxu0 0.0
    %905 = vmatprep.subr.mxu0 0.0
    %906 = vmatpush1.xpose.msra.mxu0 %v873
    %907 = vmatprep.subr.mxu0 0.0
    %908 = vmatpush2.xpose.msra.mxu0 0.0
    %909 = vmatprep.subr.mxu0 0.0
    %910 = vmatpush2.xpose.msra.mxu0 0.0
    %911 = vmatprep.subr.mxu0 0.0
    %912 = vmatpush2.xpose.msra.mxu0 0.0
    %913 = vmatprep.subr.mxu0 0.0
    %914 = vmatpush2.xpose.msra.mxu0 0.0
    %915 = vmatprep.subr.mxu0 0.0
    %916 = vmatpush2.xpose.msra.mxu0 0.0
    %917 = vmatprep.subr.mxu0 0.0
    %918 = vmatpush2.xpose.msra.mxu0 0.0
    %919 = vmatprep.subr.mxu0 0.0
    %920 = vmatpush2.xpose.msra.mxu0 0.0
    %921 = vmatprep.subr.mxu0 0.0
    %922 = vmatpush2.xpose.msra.mxu0 0.0
    %923 = vmatprep.subr.mxu0 0.0
    %924 = vmatpush2.xpose.msra.mxu0 0.0
    %925 = vmatprep.subr.mxu0 0.0
    %926 = vmatpush2.xpose.msra.mxu0 0.0
    %927 = vmatprep.subr.mxu0 0.0
    %928 = vmatpush2.xpose.msra.mxu0 0.0
    %929 = vmatprep.subr.mxu0 0.0
    %930 = vmatpush2.xpose.msra.mxu0 0.0
    %931 = vmatprep.subr.mxu0 0.0
    %932 = vmatpush2.xpose.msra.mxu0 0.0
    %933 = vmatprep.subr.mxu0 0.0
    %934 = vmatpush2.xpose.msra.mxu0 0.0
    %935 = vmatprep.subr.mxu0 0.0
    %936 = vmatpush2.xpose.msra.mxu0 0.0
    %937 = vmatprep.subr.mxu0 0.0
    %938 = vmatpush2.xpose.msra.mxu0 0.0
    %939 = vmatprep.mubr.f32.mxu0 0.0
    %940 = vmatmul.mubr.f32.gmra.mxu0 %v871
    %v941 = vpop.f32.mrf.mxu0
    %v942 = vadd.f32 0.0, %v941
    %v943 = vpop.f32.mrf.mxu0
    %944 = vdwg.mxu0
    %v945 = vsel %vm325, %v397, -inf
    %946 = vmax.xlane.f32.xlu0 %v945
    %v947 = vpop.xlane.xlu0 %946
    %v948 = vsub.f32 %v397, %v947
    %v949 = vmul.f32 %v948, 1.442695
    %v950 = vpow.pop %v949
    %v951 = vsel %vm325, %v950, 0.0
    %952 = vadd.xlane.f32.xlu0 %v951
    %v953 = vpop.xlane.xlu0 %952
    %v954 = vrcp.pop %v953
    %v955 = vmul.f32 %v953, %v954
    %v956 = vsub.f32 2.0, %v955
    %v957 = vmul.f32 %v954, %v956
    %v958 = vmul.f32 %v950, %v957
    %v959 = vsel %vm325, %v475, -inf
    %960 = vmax.xlane.f32.xlu0 %v959
    %v961 = vpop.xlane.xlu0 %960
    %v962 = vsub.f32 %v475, %v961
    %v963 = vmul.f32 %v962, 1.442695
    %v964 = vpow.pop %v963
    %v965 = vsel %vm325, %v964, 0.0
    %966 = vadd.xlane.f32.xlu0 %v965
    %v967 = vpop.xlane.xlu0 %966
    %v968 = vrcp.pop %v967
    %v969 = vmul.f32 %v967, %v968
    %v970 = vsub.f32 2.0, %v969
    %v971 = vmul.f32 %v968, %v970
    %v972 = vmul.f32 %v964, %v971
    %v973 = vsel %vm325, %v553, -inf
    %974 = vmax.xlane.f32.xlu0 %v973
    %v975 = vpop.xlane.xlu0 %974
    %v976 = vsub.f32 %v553, %v975
    %v977 = vmul.f32 %v976, 1.442695
    %v978 = vpow.pop %v977
    %v979 = vsel %vm325, %v978, 0.0
    %980 = vadd.xlane.f32.xlu0 %v979
    %v981 = vpop.xlane.xlu0 %980
    %v982 = vrcp.pop %v981
    %v983 = vmul.f32 %v981, %v982
    %v984 = vsub.f32 2.0, %v983
    %v985 = vmul.f32 %v982, %v984
    %v986 = vmul.f32 %v978, %v985
    %v987 = vsel %vm325, %v631, -inf
    %988 = vmax.xlane.f32.xlu0 %v987
    %v989 = vpop.xlane.xlu0 %988
    %v990 = vsub.f32 %v631, %v989
    %v991 = vmul.f32 %v990, 1.442695
    %v992 = vpow.pop %v991
    %v993 = vsel %vm325, %v992, 0.0
    %994 = vadd.xlane.f32.xlu0 %v993
    %v995 = vpop.xlane.xlu0 %994
    %v996 = vrcp.pop %v995
    %v997 = vmul.f32 %v995, %v996
    %v998 = vsub.f32 2.0, %v997
    %v999 = vmul.f32 %v996, %v998
    %v1000 = vmul.f32 %v992, %v999
    %v1001 = vsel %vm325, %v708, -inf
    %1002 = vmax.xlane.f32.xlu0 %v1001
    %v1003 = vpop.xlane.xlu0 %1002
    %v1004 = vsub.f32 %v708, %v1003
    %v1005 = vmul.f32 %v1004, 1.442695
    %v1006 = vpow.pop %v1005
    %v1007 = vsel %vm325, %v1006, 0.0
    %1008 = vadd.xlane.f32.xlu0 %v1007
    %v1009 = vpop.xlane.xlu0 %1008
    %v1010 = vrcp.pop %v1009
    %v1011 = vmul.f32 %v1009, %v1010
    %v1012 = vsub.f32 2.0, %v1011
    %v1013 = vmul.f32 %v1010, %v1012
    %v1014 = vmul.f32 %v1006, %v1013
    %v1015 = vsel %vm325, %v786, -inf
    %1016 = vmax.xlane.f32.xlu0 %v1015
    %v1017 = vpop.xlane.xlu0 %1016
    %v1018 = vsub.f32 %v786, %v1017
    %v1019 = vmul.f32 %v1018, 1.442695
    %v1020 = vpow.pop %v1019
    %v1021 = vsel %vm325, %v1020, 0.0
    %1022 = vadd.xlane.f32.xlu0 %v1021
    %v1023 = vpop.xlane.xlu0 %1022
    %v1024 = vrcp.pop %v1023
    %v1025 = vmul.f32 %v1023, %v1024
    %v1026 = vsub.f32 2.0, %v1025
    %v1027 = vmul.f32 %v1024, %v1026
    %v1028 = vmul.f32 %v1020, %v1027
    %v1029 = vsel %vm325, %v864, -inf
    %1030 = vmax.xlane.f32.xlu0 %v1029
    %v1031 = vpop.xlane.xlu0 %1030
    %v1032 = vsub.f32 %v864, %v1031
    %v1033 = vmul.f32 %v1032, 1.442695
    %v1034 = vpow.pop %v1033
    %v1035 = vsel %vm325, %v1034, 0.0
    %1036 = vadd.xlane.f32.xlu0 %v1035
    %v1037 = vpop.xlane.xlu0 %1036
    %v1038 = vrcp.pop %v1037
    %v1039 = vmul.f32 %v1037, %v1038
    %v1040 = vsub.f32 2.0, %v1039
    %v1041 = vmul.f32 %v1038, %v1040
    %v1042 = vmul.f32 %v1034, %v1041
    %v1043 = vsel %vm325, %v942, -inf
    %1044 = vmax.xlane.f32.xlu0 %v1043
    %v1045 = vpop.xlane.xlu0 %1044
    %v1046 = vsub.f32 %v942, %v1045
    %v1047 = vmul.f32 %v1046, 1.442695
    %v1048 = vpow.pop %v1047
    %v1049 = vsel %vm325, %v1048, 0.0
    %1050 = vadd.xlane.f32.xlu0 %v1049
    %v1051 = vpop.xlane.xlu0 %1050
    %v1052 = vrcp.pop %v1051
    %v1053 = vmul.f32 %v1051, %v1052
    %v1054 = vsub.f32 2.0, %v1053
    %v1055 = vmul.f32 %v1052, %v1054
    %v1056 = vmul.f32 %v1048, %v1055
    %1057 = vrot.lane.b32.xlu0 %v225, 64
    %v1058 = vpop.permute.xlu0 %1057
    %v1061 = vsel %vm325, %v958, 0
    %1063 = vmatprep.subr.mxu0 0.0
    %1064 = vmatpush1.msra.mxu0 0.0
    %1065 = vmatprep.subr.mxu0 0.0
    %1066 = vmatpush1.msra.mxu0 0.0
    %1067 = vmatprep.subr.mxu0 0.0
    %1068 = vmatpush1.msra.mxu0 0.0
    %1069 = vmatprep.subr.mxu0 0.0
    %1070 = vmatpush1.msra.mxu0 0.0
    %1071 = vmatprep.subr.mxu0 0.0
    %1072 = vmatpush1.msra.mxu0 0.0
    %1073 = vmatprep.subr.mxu0 0.0
    %1074 = vmatpush1.msra.mxu0 0.0
    %1075 = vmatprep.subr.mxu0 0.0
    %1076 = vmatpush1.msra.mxu0 0.0
    %1077 = vmatprep.subr.mxu0 0.0
    %1078 = vmatpush1.msra.mxu0 0.0
    %1079 = vmatprep.subr.mxu0 0.0
    %1080 = vmatpush1.msra.mxu0 0.0
    %1081 = vmatprep.subr.mxu0 0.0
    %1082 = vmatpush1.msra.mxu0 0.0
    %1083 = vmatprep.subr.mxu0 0.0
    %1084 = vmatpush1.msra.mxu0 0.0
    %1085 = vmatprep.subr.mxu0 0.0
    %1086 = vmatpush1.msra.mxu0 0.0
    %1087 = vmatprep.subr.mxu0 0.0
    %1088 = vmatpush1.msra.mxu0 0.0
    %1089 = vmatprep.subr.mxu0 0.0
    %1090 = vmatpush1.msra.mxu0 0.0
    %1091 = vmatprep.subr.mxu0 0.0
    %1092 = vmatpush1.msra.mxu0 0.0
    %1093 = vmatprep.subr.mxu0 0.0
    %1094 = vmatpush1.msra.mxu0 %v1058
    %1095 = vmatprep.subr.mxu0 0.0
    %1096 = vmatpush2.msra.mxu0 0.0
    %1097 = vmatprep.subr.mxu0 0.0
    %1098 = vmatpush2.msra.mxu0 0.0
    %1099 = vmatprep.subr.mxu0 0.0
    %1100 = vmatpush2.msra.mxu0 0.0
    %1101 = vmatprep.subr.mxu0 0.0
    %1102 = vmatpush2.msra.mxu0 0.0
    %1103 = vmatprep.subr.mxu0 0.0
    %1104 = vmatpush2.msra.mxu0 0.0
    %1105 = vmatprep.subr.mxu0 0.0
    %1106 = vmatpush2.msra.mxu0 0.0
    %1107 = vmatprep.subr.mxu0 0.0
    %1108 = vmatpush2.msra.mxu0 0.0
    %1109 = vmatprep.subr.mxu0 0.0
    %1110 = vmatpush2.msra.mxu0 0.0
    %1111 = vmatprep.subr.mxu0 0.0
    %1112 = vmatpush2.msra.mxu0 0.0
    %1113 = vmatprep.subr.mxu0 0.0
    %1114 = vmatpush2.msra.mxu0 0.0
    %1115 = vmatprep.subr.mxu0 0.0
    %1116 = vmatpush2.msra.mxu0 0.0
    %1117 = vmatprep.subr.mxu0 0.0
    %1118 = vmatpush2.msra.mxu0 0.0
    %1119 = vmatprep.subr.mxu0 0.0
    %1120 = vmatpush2.msra.mxu0 0.0
    %1121 = vmatprep.subr.mxu0 0.0
    %1122 = vmatpush2.msra.mxu0 0.0
    %1123 = vmatprep.subr.mxu0 0.0
    %1124 = vmatpush2.msra.mxu0 0.0
    %1125 = vmatprep.subr.mxu0 0.0
    %1126 = vmatpush2.msra.mxu0 0.0
    %1127 = vmatprep.mubr.f32.mxu0 0.0
    %1128 = vmatmul.mubr.f32.gmra.mxu0 %v1061
    %v1129 = vpop.f32.mrf.mxu0
    %v1130 = vadd.f32 0.0, %v1129
    %v1131 = vpop.f32.mrf.mxu0
    %1132 = vdwg.mxu0
    %1133 = vrot.lane.b32.xlu0 %v225, 56
    %v1134 = vpop.permute.xlu0 %1133
    %v1137 = vsel %vm325, %v972, 0
    %1139 = vmatprep.subr.mxu0 0.0
    %1140 = vmatpush1.msra.mxu0 0.0
    %1141 = vmatprep.subr.mxu0 0.0
    %1142 = vmatpush1.msra.mxu0 0.0
    %1143 = vmatprep.subr.mxu0 0.0
    %1144 = vmatpush1.msra.mxu0 0.0
    %1145 = vmatprep.subr.mxu0 0.0
    %1146 = vmatpush1.msra.mxu0 0.0
    %1147 = vmatprep.subr.mxu0 0.0
    %1148 = vmatpush1.msra.mxu0 0.0
    %1149 = vmatprep.subr.mxu0 0.0
    %1150 = vmatpush1.msra.mxu0 0.0
    %1151 = vmatprep.subr.mxu0 0.0
    %1152 = vmatpush1.msra.mxu0 0.0
    %1153 = vmatprep.subr.mxu0 0.0
    %1154 = vmatpush1.msra.mxu0 0.0
    %1155 = vmatprep.subr.mxu0 0.0
    %1156 = vmatpush1.msra.mxu0 0.0
    %1157 = vmatprep.subr.mxu0 0.0
    %1158 = vmatpush1.msra.mxu0 0.0
    %1159 = vmatprep.subr.mxu0 0.0
    %1160 = vmatpush1.msra.mxu0 0.0
    %1161 = vmatprep.subr.mxu0 0.0
    %1162 = vmatpush1.msra.mxu0 0.0
    %1163 = vmatprep.subr.mxu0 0.0
    %1164 = vmatpush1.msra.mxu0 0.0
    %1165 = vmatprep.subr.mxu0 0.0
    %1166 = vmatpush1.msra.mxu0 0.0
    %1167 = vmatprep.subr.mxu0 0.0
    %1168 = vmatpush1.msra.mxu0 0.0
    %1169 = vmatprep.subr.mxu0 0.0
    %1170 = vmatpush1.msra.mxu0 %v1134
    %1171 = vmatprep.subr.mxu0 0.0
    %1172 = vmatpush2.msra.mxu0 0.0
    %1173 = vmatprep.subr.mxu0 0.0
    %1174 = vmatpush2.msra.mxu0 0.0
    %1175 = vmatprep.subr.mxu0 0.0
    %1176 = vmatpush2.msra.mxu0 0.0
    %1177 = vmatprep.subr.mxu0 0.0
    %1178 = vmatpush2.msra.mxu0 0.0
    %1179 = vmatprep.subr.mxu0 0.0
    %1180 = vmatpush2.msra.mxu0 0.0
    %1181 = vmatprep.subr.mxu0 0.0
    %1182 = vmatpush2.msra.mxu0 0.0
    %1183 = vmatprep.subr.mxu0 0.0
    %1184 = vmatpush2.msra.mxu0 0.0
    %1185 = vmatprep.subr.mxu0 0.0
    %1186 = vmatpush2.msra.mxu0 0.0
    %1187 = vmatprep.subr.mxu0 0.0
    %1188 = vmatpush2.msra.mxu0 0.0
    %1189 = vmatprep.subr.mxu0 0.0
    %1190 = vmatpush2.msra.mxu0 0.0
    %1191 = vmatprep.subr.mxu0 0.0
    %1192 = vmatpush2.msra.mxu0 0.0
    %1193 = vmatprep.subr.mxu0 0.0
    %1194 = vmatpush2.msra.mxu0 0.0
    %1195 = vmatprep.subr.mxu0 0.0
    %1196 = vmatpush2.msra.mxu0 0.0
    %1197 = vmatprep.subr.mxu0 0.0
    %1198 = vmatpush2.msra.mxu0 0.0
    %1199 = vmatprep.subr.mxu0 0.0
    %1200 = vmatpush2.msra.mxu0 0.0
    %1201 = vmatprep.subr.mxu0 0.0
    %1202 = vmatpush2.msra.mxu0 0.0
    %1203 = vmatprep.mubr.f32.mxu0 0.0
    %1204 = vmatmul.mubr.f32.gmra.mxu0 %v1137
    %v1205 = vpop.f32.mrf.mxu0
    %v1206 = vadd.f32 0.0, %v1205
    %v1207 = vpop.f32.mrf.mxu0
    %1208 = vdwg.mxu0
    %1209 = vrot.lane.b32.xlu0 %v225, 48
    %v1210 = vpop.permute.xlu0 %1209
    %v1213 = vsel %vm325, %v986, 0
    %1215 = vmatprep.subr.mxu0 0.0
    %1216 = vmatpush1.msra.mxu0 0.0
    %1217 = vmatprep.subr.mxu0 0.0
    %1218 = vmatpush1.msra.mxu0 0.0
    %1219 = vmatprep.subr.mxu0 0.0
    %1220 = vmatpush1.msra.mxu0 0.0
    %1221 = vmatprep.subr.mxu0 0.0
    %1222 = vmatpush1.msra.mxu0 0.0
    %1223 = vmatprep.subr.mxu0 0.0
    %1224 = vmatpush1.msra.mxu0 0.0
    %1225 = vmatprep.subr.mxu0 0.0
    %1226 = vmatpush1.msra.mxu0 0.0
    %1227 = vmatprep.subr.mxu0 0.0
    %1228 = vmatpush1.msra.mxu0 0.0
    %1229 = vmatprep.subr.mxu0 0.0
    %1230 = vmatpush1.msra.mxu0 0.0
    %1231 = vmatprep.subr.mxu0 0.0
    %1232 = vmatpush1.msra.mxu0 0.0
    %1233 = vmatprep.subr.mxu0 0.0
    %1234 = vmatpush1.msra.mxu0 0.0
    %1235 = vmatprep.subr.mxu0 0.0
    %1236 = vmatpush1.msra.mxu0 0.0
    %1237 = vmatprep.subr.mxu0 0.0
    %1238 = vmatpush1.msra.mxu0 0.0
    %1239 = vmatprep.subr.mxu0 0.0
    %1240 = vmatpush1.msra.mxu0 0.0
    %1241 = vmatprep.subr.mxu0 0.0
    %1242 = vmatpush1.msra.mxu0 0.0
    %1243 = vmatprep.subr.mxu0 0.0
    %1244 = vmatpush1.msra.mxu0 0.0
    %1245 = vmatprep.subr.mxu0 0.0
    %1246 = vmatpush1.msra.mxu0 %v1210
    %1247 = vmatprep.subr.mxu0 0.0
    %1248 = vmatpush2.msra.mxu0 0.0
    %1249 = vmatprep.subr.mxu0 0.0
    %1250 = vmatpush2.msra.mxu0 0.0
    %1251 = vmatprep.subr.mxu0 0.0
    %1252 = vmatpush2.msra.mxu0 0.0
    %1253 = vmatprep.subr.mxu0 0.0
    %1254 = vmatpush2.msra.mxu0 0.0
    %1255 = vmatprep.subr.mxu0 0.0
    %1256 = vmatpush2.msra.mxu0 0.0
    %1257 = vmatprep.subr.mxu0 0.0
    %1258 = vmatpush2.msra.mxu0 0.0
    %1259 = vmatprep.subr.mxu0 0.0
    %1260 = vmatpush2.msra.mxu0 0.0
    %1261 = vmatprep.subr.mxu0 0.0
    %1262 = vmatpush2.msra.mxu0 0.0
    %1263 = vmatprep.subr.mxu0 0.0
    %1264 = vmatpush2.msra.mxu0 0.0
    %1265 = vmatprep.subr.mxu0 0.0
    %1266 = vmatpush2.msra.mxu0 0.0
    %1267 = vmatprep.subr.mxu0 0.0
    %1268 = vmatpush2.msra.mxu0 0.0
    %1269 = vmatprep.subr.mxu0 0.0
    %1270 = vmatpush2.msra.mxu0 0.0
    %1271 = vmatprep.subr.mxu0 0.0
    %1272 = vmatpush2.msra.mxu0 0.0
    %1273 = vmatprep.subr.mxu0 0.0
    %1274 = vmatpush2.msra.mxu0 0.0
    %1275 = vmatprep.subr.mxu0 0.0
    %1276 = vmatpush2.msra.mxu0 0.0
    %1277 = vmatprep.subr.mxu0 0.0
    %1278 = vmatpush2.msra.mxu0 0.0
    %1279 = vmatprep.mubr.f32.mxu0 0.0
    %1280 = vmatmul.mubr.f32.gmra.mxu0 %v1213
    %v1281 = vpop.f32.mrf.mxu0
    %v1282 = vadd.f32 0.0, %v1281
    %v1283 = vpop.f32.mrf.mxu0
    %1284 = vdwg.mxu0
    %1285 = vrot.lane.b32.xlu0 %v225, 40
    %v1286 = vpop.permute.xlu0 %1285
    %v1289 = vsel %vm325, %v1000, 0
    %1291 = vmatprep.subr.mxu0 0.0
    %1292 = vmatpush1.msra.mxu0 0.0
    %1293 = vmatprep.subr.mxu0 0.0
    %1294 = vmatpush1.msra.mxu0 0.0
    %1295 = vmatprep.subr.mxu0 0.0
    %1296 = vmatpush1.msra.mxu0 0.0
    %1297 = vmatprep.subr.mxu0 0.0
    %1298 = vmatpush1.msra.mxu0 0.0
    %1299 = vmatprep.subr.mxu0 0.0
    %1300 = vmatpush1.msra.mxu0 0.0
    %1301 = vmatprep.subr.mxu0 0.0
    %1302 = vmatpush1.msra.mxu0 0.0
    %1303 = vmatprep.subr.mxu0 0.0
    %1304 = vmatpush1.msra.mxu0 0.0
    %1305 = vmatprep.subr.mxu0 0.0
    %1306 = vmatpush1.msra.mxu0 0.0
    %1307 = vmatprep.subr.mxu0 0.0
    %1308 = vmatpush1.msra.mxu0 0.0
    %1309 = vmatprep.subr.mxu0 0.0
    %1310 = vmatpush1.msra.mxu0 0.0
    %1311 = vmatprep.subr.mxu0 0.0
    %1312 = vmatpush1.msra.mxu0 0.0
    %1313 = vmatprep.subr.mxu0 0.0
    %1314 = vmatpush1.msra.mxu0 0.0
    %1315 = vmatprep.subr.mxu0 0.0
    %1316 = vmatpush1.msra.mxu0 0.0
    %1317 = vmatprep.subr.mxu0 0.0
    %1318 = vmatpush1.msra.mxu0 0.0
    %1319 = vmatprep.subr.mxu0 0.0
    %1320 = vmatpush1.msra.mxu0 0.0
    %1321 = vmatprep.subr.mxu0 0.0
    %1322 = vmatpush1.msra.mxu0 %v1286
    %1323 = vmatprep.subr.mxu0 0.0
    %1324 = vmatpush2.msra.mxu0 0.0
    %1325 = vmatprep.subr.mxu0 0.0
    %1326 = vmatpush2.msra.mxu0 0.0
    %1327 = vmatprep.subr.mxu0 0.0
    %1328 = vmatpush2.msra.mxu0 0.0
    %1329 = vmatprep.subr.mxu0 0.0
    %1330 = vmatpush2.msra.mxu0 0.0
    %1331 = vmatprep.subr.mxu0 0.0
    %1332 = vmatpush2.msra.mxu0 0.0
    %1333 = vmatprep.subr.mxu0 0.0
    %1334 = vmatpush2.msra.mxu0 0.0
    %1335 = vmatprep.subr.mxu0 0.0
    %1336 = vmatpush2.msra.mxu0 0.0
    %1337 = vmatprep.subr.mxu0 0.0
    %1338 = vmatpush2.msra.mxu0 0.0
    %1339 = vmatprep.subr.mxu0 0.0
    %1340 = vmatpush2.msra.mxu0 0.0
    %1341 = vmatprep.subr.mxu0 0.0
    %1342 = vmatpush2.msra.mxu0 0.0
    %1343 = vmatprep.subr.mxu0 0.0
    %1344 = vmatpush2.msra.mxu0 0.0
    %1345 = vmatprep.subr.mxu0 0.0
    %1346 = vmatpush2.msra.mxu0 0.0
    %1347 = vmatprep.subr.mxu0 0.0
    %1348 = vmatpush2.msra.mxu0 0.0
    %1349 = vmatprep.subr.mxu0 0.0
    %1350 = vmatpush2.msra.mxu0 0.0
    %1351 = vmatprep.subr.mxu0 0.0
    %1352 = vmatpush2.msra.mxu0 0.0
    %1353 = vmatprep.subr.mxu0 0.0
    %1354 = vmatpush2.msra.mxu0 0.0
    %1355 = vmatprep.mubr.f32.mxu0 0.0
    %1356 = vmatmul.mubr.f32.gmra.mxu0 %v1289
    %v1357 = vpop.f32.mrf.mxu0
    %v1358 = vadd.f32 0.0, %v1357
    %v1359 = vpop.f32.mrf.mxu0
    %1360 = vdwg.mxu0
    %1362 = vrot.lane.b32.xlu0 %v1206, 8
    %v1363 = vpop.permute.xlu0 %1362
    %1366 = vrot.lane.b32.xlu0 %v1282, 16
    %v1367 = vpop.permute.xlu0 %1366
    %1370 = vrot.lane.b32.xlu0 %v1358, 24
    %v1371 = vpop.permute.xlu0 %1370
    %v1373 = vsel %vm325, %v1130, %v1363
    %vm1374 = vcmask 130048
    %v1375 = vsel %vm1374, %v1373, %v1367
    %vm1376 = vcmask 195584
    %v1377 = vsel %vm1376, %v1375, %v1371
    %v1379 = vlaneseq
    %v1380 = vshrl.u32 %v1379, 7
    %v1381 = vsub.s32 0, %v1380
    %v1382 = vrot.slane %v99, %v1381
    %v1385 = vsel %vm155, %v1377, 0
    %1387 = vmatprep.subr.mxu0 0.0
    %1388 = vmatpush1.msra.mxu0 0.0
    %1389 = vmatprep.subr.mxu0 0.0
    %1390 = vmatpush1.msra.mxu0 0.0
    %1391 = vmatprep.subr.mxu0 0.0
    %1392 = vmatpush1.msra.mxu0 0.0
    %1393 = vmatprep.subr.mxu0 0.0
    %1394 = vmatpush1.msra.mxu0 0.0
    %1395 = vmatprep.subr.mxu0 0.0
    %1396 = vmatpush1.msra.mxu0 0.0
    %1397 = vmatprep.subr.mxu0 0.0
    %1398 = vmatpush1.msra.mxu0 0.0
    %1399 = vmatprep.subr.mxu0 0.0
    %1400 = vmatpush1.msra.mxu0 0.0
    %1401 = vmatprep.subr.mxu0 0.0
    %1402 = vmatpush1.msra.mxu0 0.0
    %1403 = vmatprep.subr.mxu0 0.0
    %1404 = vmatpush1.msra.mxu0 0.0
    %1405 = vmatprep.subr.mxu0 0.0
    %1406 = vmatpush1.msra.mxu0 0.0
    %1407 = vmatprep.subr.mxu0 0.0
    %1408 = vmatpush1.msra.mxu0 0.0
    %1409 = vmatprep.subr.mxu0 0.0
    %1410 = vmatpush1.msra.mxu0 0.0
    %1411 = vmatprep.subr.mxu0 0.0
    %1412 = vmatpush1.msra.mxu0 %v98
    %1413 = vmatprep.subr.mxu0 0.0
    %1414 = vmatpush1.msra.mxu0 %v97
    %1415 = vmatprep.subr.mxu0 0.0
    %1416 = vmatpush1.msra.mxu0 %v96
    %1417 = vmatprep.subr.mxu0 0.0
    %1418 = vmatpush1.msra.mxu0 %v95
    %1419 = vmatprep.subr.mxu0 0.0
    %1420 = vmatpush2.msra.mxu0 0.0
    %1421 = vmatprep.subr.mxu0 0.0
    %1422 = vmatpush2.msra.mxu0 0.0
    %1423 = vmatprep.subr.mxu0 0.0
    %1424 = vmatpush2.msra.mxu0 0.0
    %1425 = vmatprep.subr.mxu0 0.0
    %1426 = vmatpush2.msra.mxu0 0.0
    %1427 = vmatprep.subr.mxu0 0.0
    %1428 = vmatpush2.msra.mxu0 0.0
    %1429 = vmatprep.subr.mxu0 0.0
    %1430 = vmatpush2.msra.mxu0 0.0
    %1431 = vmatprep.subr.mxu0 0.0
    %1432 = vmatpush2.msra.mxu0 0.0
    %1433 = vmatprep.subr.mxu0 0.0
    %1434 = vmatpush2.msra.mxu0 0.0
    %1435 = vmatprep.subr.mxu0 0.0
    %1436 = vmatpush2.msra.mxu0 0.0
    %1437 = vmatprep.subr.mxu0 0.0
    %1438 = vmatpush2.msra.mxu0 0.0
    %1439 = vmatprep.subr.mxu0 0.0
    %1440 = vmatpush2.msra.mxu0 0.0
    %1441 = vmatprep.subr.mxu0 0.0
    %1442 = vmatpush2.msra.mxu0 0.0
    %1443 = vmatprep.subr.mxu0 0.0
    %1444 = vmatpush2.msra.mxu0 0.0
    %1445 = vmatprep.subr.mxu0 0.0
    %1446 = vmatpush2.msra.mxu0 0.0
    %1447 = vmatprep.subr.mxu0 0.0
    %1448 = vmatpush2.msra.mxu0 0.0
    %1449 = vmatprep.subr.mxu0 0.0
    %1450 = vmatpush2.msra.mxu0 0.0
    %1451 = vmatprep.mubr.f32.mxu0 0.0
    %1452 = vmatmul.mubr.f32.gmra.mxu0 %v1385
    %v1453 = vpop.f32.mrf.mxu0
    %v1454 = vadd.f32 %v1382, %v1453
    %v1455 = vpop.f32.mrf.mxu0
    %1456 = vdwg.mxu0
    %v1458 = vadd.f32 %v1454, %v154
    %v1460 = vsel %vm155, %v1458, 0
    %1462 = vmatprep.subr.mxu0 0.0
    %1463 = vmatpush1.msra.mxu0 0.0
    %1464 = vmatprep.subr.mxu0 0.0
    %1465 = vmatpush1.msra.mxu0 0.0
    %1466 = vmatprep.subr.mxu0 0.0
    %1467 = vmatpush1.msra.mxu0 0.0
    %1468 = vmatprep.subr.mxu0 0.0
    %1469 = vmatpush1.msra.mxu0 0.0
    %1470 = vmatprep.subr.mxu0 0.0
    %1471 = vmatpush1.msra.mxu0 0.0
    %1472 = vmatprep.subr.mxu0 0.0
    %1473 = vmatpush1.msra.mxu0 0.0
    %1474 = vmatprep.subr.mxu0 0.0
    %1475 = vmatpush1.msra.mxu0 0.0
    %1476 = vmatprep.subr.mxu0 0.0
    %1477 = vmatpush1.msra.mxu0 0.0
    %1478 = vmatprep.subr.mxu0 0.0
    %1479 = vmatpush1.msra.mxu0 0.0
    %1480 = vmatprep.subr.mxu0 0.0
    %1481 = vmatpush1.msra.mxu0 0.0
    %1482 = vmatprep.subr.mxu0 0.0
    %1483 = vmatpush1.msra.mxu0 0.0
    %1484 = vmatprep.subr.mxu0 0.0
    %1485 = vmatpush1.msra.mxu0 0.0
    %1486 = vmatprep.subr.mxu0 0.0
    %1487 = vmatpush1.msra.mxu0 %v103
    %1488 = vmatprep.subr.mxu0 0.0
    %1489 = vmatpush1.msra.mxu0 %v102
    %1490 = vmatprep.subr.mxu0 0.0
    %1491 = vmatpush1.msra.mxu0 %v101
    %1492 = vmatprep.subr.mxu0 0.0
    %1493 = vmatpush1.msra.mxu0 %v100
    %1494 = vmatprep.subr.mxu0 0.0
    %1495 = vmatpush2.msra.mxu0 0.0
    %1496 = vmatprep.subr.mxu0 0.0
    %1497 = vmatpush2.msra.mxu0 0.0
    %1498 = vmatprep.subr.mxu0 0.0
    %1499 = vmatpush2.msra.mxu0 0.0
    %1500 = vmatprep.subr.mxu0 0.0
    %1501 = vmatpush2.msra.mxu0 0.0
    %1502 = vmatprep.subr.mxu0 0.0
    %1503 = vmatpush2.msra.mxu0 0.0
    %1504 = vmatprep.subr.mxu0 0.0
    %1505 = vmatpush2.msra.mxu0 0.0
    %1506 = vmatprep.subr.mxu0 0.0
    %1507 = vmatpush2.msra.mxu0 0.0
    %1508 = vmatprep.subr.mxu0 0.0
    %1509 = vmatpush2.msra.mxu0 0.0
    %1510 = vmatprep.subr.mxu0 0.0
    %1511 = vmatpush2.msra.mxu0 0.0
    %1512 = vmatprep.subr.mxu0 0.0
    %1513 = vmatpush2.msra.mxu0 0.0
    %1514 = vmatprep.subr.mxu0 0.0
    %1515 = vmatpush2.msra.mxu0 0.0
    %1516 = vmatprep.subr.mxu0 0.0
    %1517 = vmatpush2.msra.mxu0 0.0
    %1518 = vmatprep.subr.mxu0 0.0
    %1519 = vmatpush2.msra.mxu0 0.0
    %1520 = vmatprep.subr.mxu0 0.0
    %1521 = vmatpush2.msra.mxu0 0.0
    %1522 = vmatprep.subr.mxu0 0.0
    %1523 = vmatpush2.msra.mxu0 0.0
    %1524 = vmatprep.subr.mxu0 0.0
    %1525 = vmatpush2.msra.mxu0 0.0
    %1526 = vmatprep.mubr.f32.mxu0 0.0
    %1527 = vmatmul.mubr.f32.gmra.mxu0 %v1460
    %v1528 = vpop.f32.mrf.mxu0
    %v1529 = vadd.f32 %v1458, %v1528
    %v1530 = vpop.f32.mrf.mxu0
    %1531 = vdwg.mxu0
    %v1533 = vcombine.high %v1529, %v1529
    %v1535 = vunpack.c.l.s4 1966171168
    %v1536 = vunpack.c.0.s8 %v1535
    %v1537 = vlaneseq
    %v1538 = vshrl.u32 %v1537, 7
    %v1539 = vsub.s32 %v1536, %v1538
    %v1540 = vrot.slane %v1529, %v1539
    %v1542 = vunpack.c.l.s4 1966171168
    %v1543 = vunpack.c.0.s8 %v1542
    %v1544 = vlaneseq
    %v1545 = vshrl.u32 %v1544, 7
    %v1546 = vsub.s32 %v1543, %v1545
    %v1547 = vrot.slane %v1533, %v1546
    %v1548 = vcombine.high %v1540, %v1540
    %v1549 = vcombine.high %v1547, %v1547
    %v1551 = vunpack.c.l.s4 1966171168
    %v1552 = vunpack.c.0.s8 %v1551
    %v1553 = vlaneseq
    %v1554 = vshrl.u32 %v1553, 7
    %v1555 = vsub.s32 %v1552, %v1554
    %v1556 = vrot.slane %v1540, %v1555
    %v1558 = vunpack.c.l.s4 1966171168
    %v1559 = vunpack.c.0.s8 %v1558
    %v1560 = vlaneseq
    %v1561 = vshrl.u32 %v1560, 7
    %v1562 = vsub.s32 %v1559, %v1561
    %v1563 = vrot.slane %v1547, %v1562
    %v1565 = vunpack.c.l.s4 1966171168
    %v1566 = vunpack.c.0.s8 %v1565
    %v1567 = vlaneseq
    %v1568 = vshrl.u32 %v1567, 7
    %v1569 = vsub.s32 %v1566, %v1568
    %v1570 = vrot.slane %v1548, %v1569
    %v1572 = vunpack.c.l.s4 1966171168
    %v1573 = vunpack.c.0.s8 %v1572
    %v1574 = vlaneseq
    %v1575 = vshrl.u32 %v1574, 7
    %v1576 = vsub.s32 %v1573, %v1575
    %v1577 = vrot.slane %v1549, %v1576
    %v1578 = vcombine.high %v1556, %v1556
    %v1579 = vcombine.high %v1563, %v1563
    %v1580 = vcombine.high %v1570, %v1570
    %v1581 = vcombine.high %v1577, %v1577
    %vm1590 = vcmask 253952
    %1591 = vst.msk [vmem:[#allocation11] sm:$0x1] %vm1590, %v1556
    %1592 = vst.msk [vmem:[#allocation11 + $0x2] sm:$0x1] %vm1590, %v1570
    %1593 = vst.msk [vmem:[#allocation11 + $0x4] sm:$0x1] %vm1590, %v1578
    %1594 = vst.msk [vmem:[#allocation11 + $0x6] sm:$0x1] %vm1590, %v1580
    %1595 = vst.msk [vmem:[#allocation11 + $0x8] sm:$0x1] %vm1590, %v1563
    %1596 = vst.msk [vmem:[#allocation11 + $0xa] sm:$0x1] %vm1590, %v1577
    %1597 = vst.msk [vmem:[#allocation11 + $0xc] sm:$0x1] %vm1590, %v1579
    %1598 = vst.msk [vmem:[#allocation11 + $0xe] sm:$0x1] %vm1590, %v1581
    %1599 = vrot.lane.b32.xlu0 %v319, 64
    %v1600 = vpop.permute.xlu0 %1599
    %v1603 = vsel %vm325, %v1014, 0
    %1605 = vmatprep.subr.mxu0 0.0
    %1606 = vmatpush1.msra.mxu0 0.0
    %1607 = vmatprep.subr.mxu0 0.0
    %1608 = vmatpush1.msra.mxu0 0.0
    %1609 = vmatprep.subr.mxu0 0.0
    %1610 = vmatpush1.msra.mxu0 0.0
    %1611 = vmatprep.subr.mxu0 0.0
    %1612 = vmatpush1.msra.mxu0 0.0
    %1613 = vmatprep.subr.mxu0 0.0
    %1614 = vmatpush1.msra.mxu0 0.0
    %1615 = vmatprep.subr.mxu0 0.0
    %1616 = vmatpush1.msra.mxu0 0.0
    %1617 = vmatprep.subr.mxu0 0.0
    %1618 = vmatpush1.msra.mxu0 0.0
    %1619 = vmatprep.subr.mxu0 0.0
    %1620 = vmatpush1.msra.mxu0 0.0
    %1621 = vmatprep.subr.mxu0 0.0
    %1622 = vmatpush1.msra.mxu0 0.0
    %1623 = vmatprep.subr.mxu0 0.0
    %1624 = vmatpush1.msra.mxu0 0.0
    %1625 = vmatprep.subr.mxu0 0.0
    %1626 = vmatpush1.msra.mxu0 0.0
    %1627 = vmatprep.subr.mxu0 0.0
    %1628 = vmatpush1.msra.mxu0 0.0
    %1629 = vmatprep.subr.mxu0 0.0
    %1630 = vmatpush1.msra.mxu0 0.0
    %1631 = vmatprep.subr.mxu0 0.0
    %1632 = vmatpush1.msra.mxu0 0.0
    %1633 = vmatprep.subr.mxu0 0.0
    %1634 = vmatpush1.msra.mxu0 0.0
    %1635 = vmatprep.subr.mxu0 0.0
    %1636 = vmatpush1.msra.mxu0 %v1600
    %1637 = vmatprep.subr.mxu0 0.0
    %1638 = vmatpush2.msra.mxu0 0.0
    %1639 = vmatprep.subr.mxu0 0.0
    %1640 = vmatpush2.msra.mxu0 0.0
    %1641 = vmatprep.subr.mxu0 0.0
    %1642 = vmatpush2.msra.mxu0 0.0
    %1643 = vmatprep.subr.mxu0 0.0
    %1644 = vmatpush2.msra.mxu0 0.0
    %1645 = vmatprep.subr.mxu0 0.0
    %1646 = vmatpush2.msra.mxu0 0.0
    %1647 = vmatprep.subr.mxu0 0.0
    %1648 = vmatpush2.msra.mxu0 0.0
    %1649 = vmatprep.subr.mxu0 0.0
    %1650 = vmatpush2.msra.mxu0 0.0
    %1651 = vmatprep.subr.mxu0 0.0
    %1652 = vmatpush2.msra.mxu0 0.0
    %1653 = vmatprep.subr.mxu0 0.0
    %1654 = vmatpush2.msra.mxu0 0.0
    %1655 = vmatprep.subr.mxu0 0.0
    %1656 = vmatpush2.msra.mxu0 0.0
    %1657 = vmatprep.subr.mxu0 0.0
    %1658 = vmatpush2.msra.mxu0 0.0
    %1659 = vmatprep.subr.mxu0 0.0
    %1660 = vmatpush2.msra.mxu0 0.0
    %1661 = vmatprep.subr.mxu0 0.0
    %1662 = vmatpush2.msra.mxu0 0.0
    %1663 = vmatprep.subr.mxu0 0.0
    %1664 = vmatpush2.msra.mxu0 0.0
    %1665 = vmatprep.subr.mxu0 0.0
    %1666 = vmatpush2.msra.mxu0 0.0
    %1667 = vmatprep.subr.mxu0 0.0
    %1668 = vmatpush2.msra.mxu0 0.0
    %1669 = vmatprep.mubr.f32.mxu0 0.0
    %1670 = vmatmul.mubr.f32.gmra.mxu0 %v1603
    %v1671 = vpop.f32.mrf.mxu0
    %v1672 = vadd.f32 0.0, %v1671
    %v1673 = vpop.f32.mrf.mxu0
    %1674 = vdwg.mxu0
    %1675 = vrot.lane.b32.xlu0 %v319, 56
    %v1676 = vpop.permute.xlu0 %1675
    %v1679 = vsel %vm325, %v1028, 0
    %1681 = vmatprep.subr.mxu0 0.0
    %1682 = vmatpush1.msra.mxu0 0.0
    %1683 = vmatprep.subr.mxu0 0.0
    %1684 = vmatpush1.msra.mxu0 0.0
    %1685 = vmatprep.subr.mxu0 0.0
    %1686 = vmatpush1.msra.mxu0 0.0
    %1687 = vmatprep.subr.mxu0 0.0
    %1688 = vmatpush1.msra.mxu0 0.0
    %1689 = vmatprep.subr.mxu0 0.0
    %1690 = vmatpush1.msra.mxu0 0.0
    %1691 = vmatprep.subr.mxu0 0.0
    %1692 = vmatpush1.msra.mxu0 0.0
    %1693 = vmatprep.subr.mxu0 0.0
    %1694 = vmatpush1.msra.mxu0 0.0
    %1695 = vmatprep.subr.mxu0 0.0
    %1696 = vmatpush1.msra.mxu0 0.0
    %1697 = vmatprep.subr.mxu0 0.0
    %1698 = vmatpush1.msra.mxu0 0.0
    %1699 = vmatprep.subr.mxu0 0.0
    %1700 = vmatpush1.msra.mxu0 0.0
    %1701 = vmatprep.subr.mxu0 0.0
    %1702 = vmatpush1.msra.mxu0 0.0
    %1703 = vmatprep.subr.mxu0 0.0
    %1704 = vmatpush1.msra.mxu0 0.0
    %1705 = vmatprep.subr.mxu0 0.0
    %1706 = vmatpush1.msra.mxu0 0.0
    %1707 = vmatprep.subr.mxu0 0.0
    %1708 = vmatpush1.msra.mxu0 0.0
    %1709 = vmatprep.subr.mxu0 0.0
    %1710 = vmatpush1.msra.mxu0 0.0
    %1711 = vmatprep.subr.mxu0 0.0
    %1712 = vmatpush1.msra.mxu0 %v1676
    %1713 = vmatprep.subr.mxu0 0.0
    %1714 = vmatpush2.msra.mxu0 0.0
    %1715 = vmatprep.subr.mxu0 0.0
    %1716 = vmatpush2.msra.mxu0 0.0
    %1717 = vmatprep.subr.mxu0 0.0
    %1718 = vmatpush2.msra.mxu0 0.0
    %1719 = vmatprep.subr.mxu0 0.0
    %1720 = vmatpush2.msra.mxu0 0.0
    %1721 = vmatprep.subr.mxu0 0.0
    %1722 = vmatpush2.msra.mxu0 0.0
    %1723 = vmatprep.subr.mxu0 0.0
    %1724 = vmatpush2.msra.mxu0 0.0
    %1725 = vmatprep.subr.mxu0 0.0
    %1726 = vmatpush2.msra.mxu0 0.0
    %1727 = vmatprep.subr.mxu0 0.0
    %1728 = vmatpush2.msra.mxu0 0.0
    %1729 = vmatprep.subr.mxu0 0.0
    %1730 = vmatpush2.msra.mxu0 0.0
    %1731 = vmatprep.subr.mxu0 0.0
    %1732 = vmatpush2.msra.mxu0 0.0
    %1733 = vmatprep.subr.mxu0 0.0
    %1734 = vmatpush2.msra.mxu0 0.0
    %1735 = vmatprep.subr.mxu0 0.0
    %1736 = vmatpush2.msra.mxu0 0.0
    %1737 = vmatprep.subr.mxu0 0.0
    %1738 = vmatpush2.msra.mxu0 0.0
    %1739 = vmatprep.subr.mxu0 0.0
    %1740 = vmatpush2.msra.mxu0 0.0
    %1741 = vmatprep.subr.mxu0 0.0
    %1742 = vmatpush2.msra.mxu0 0.0
    %1743 = vmatprep.subr.mxu0 0.0
    %1744 = vmatpush2.msra.mxu0 0.0
    %1745 = vmatprep.mubr.f32.mxu0 0.0
    %1746 = vmatmul.mubr.f32.gmra.mxu0 %v1679
    %v1747 = vpop.f32.mrf.mxu0
    %v1748 = vadd.f32 0.0, %v1747
    %v1749 = vpop.f32.mrf.mxu0
    %1750 = vdwg.mxu0
    %1751 = vrot.lane.b32.xlu0 %v319, 48
    %v1752 = vpop.permute.xlu0 %1751
    %v1755 = vsel %vm325, %v1042, 0
    %1757 = vmatprep.subr.mxu0 0.0
    %1758 = vmatpush1.msra.mxu0 0.0
    %1759 = vmatprep.subr.mxu0 0.0
    %1760 = vmatpush1.msra.mxu0 0.0
    %1761 = vmatprep.subr.mxu0 0.0
    %1762 = vmatpush1.msra.mxu0 0.0
    %1763 = vmatprep.subr.mxu0 0.0
    %1764 = vmatpush1.msra.mxu0 0.0
    %1765 = vmatprep.subr.mxu0 0.0
    %1766 = vmatpush1.msra.mxu0 0.0
    %1767 = vmatprep.subr.mxu0 0.0
    %1768 = vmatpush1.msra.mxu0 0.0
    %1769 = vmatprep.subr.mxu0 0.0
    %1770 = vmatpush1.msra.mxu0 0.0
    %1771 = vmatprep.subr.mxu0 0.0
    %1772 = vmatpush1.msra.mxu0 0.0
    %1773 = vmatprep.subr.mxu0 0.0
    %1774 = vmatpush1.msra.mxu0 0.0
    %1775 = vmatprep.subr.mxu0 0.0
    %1776 = vmatpush1.msra.mxu0 0.0
    %1777 = vmatprep.subr.mxu0 0.0
    %1778 = vmatpush1.msra.mxu0 0.0
    %1779 = vmatprep.subr.mxu0 0.0
    %1780 = vmatpush1.msra.mxu0 0.0
    %1781 = vmatprep.subr.mxu0 0.0
    %1782 = vmatpush1.msra.mxu0 0.0
    %1783 = vmatprep.subr.mxu0 0.0
    %1784 = vmatpush1.msra.mxu0 0.0
    %1785 = vmatprep.subr.mxu0 0.0
    %1786 = vmatpush1.msra.mxu0 0.0
    %1787 = vmatprep.subr.mxu0 0.0
    %1788 = vmatpush1.msra.mxu0 %v1752
    %1789 = vmatprep.subr.mxu0 0.0
    %1790 = vmatpush2.msra.mxu0 0.0
    %1791 = vmatprep.subr.mxu0 0.0
    %1792 = vmatpush2.msra.mxu0 0.0
    %1793 = vmatprep.subr.mxu0 0.0
    %1794 = vmatpush2.msra.mxu0 0.0
    %1795 = vmatprep.subr.mxu0 0.0
    %1796 = vmatpush2.msra.mxu0 0.0
    %1797 = vmatprep.subr.mxu0 0.0
    %1798 = vmatpush2.msra.mxu0 0.0
    %1799 = vmatprep.subr.mxu0 0.0
    %1800 = vmatpush2.msra.mxu0 0.0
    %1801 = vmatprep.subr.mxu0 0.0
    %1802 = vmatpush2.msra.mxu0 0.0
    %1803 = vmatprep.subr.mxu0 0.0
    %1804 = vmatpush2.msra.mxu0 0.0
    %1805 = vmatprep.subr.mxu0 0.0
    %1806 = vmatpush2.msra.mxu0 0.0
    %1807 = vmatprep.subr.mxu0 0.0
    %1808 = vmatpush2.msra.mxu0 0.0
    %1809 = vmatprep.subr.mxu0 0.0
    %1810 = vmatpush2.msra.mxu0 0.0
    %1811 = vmatprep.subr.mxu0 0.0
    %1812 = vmatpush2.msra.mxu0 0.0
    %1813 = vmatprep.subr.mxu0 0.0
    %1814 = vmatpush2.msra.mxu0 0.0
    %1815 = vmatprep.subr.mxu0 0.0
    %1816 = vmatpush2.msra.mxu0 0.0
    %1817 = vmatprep.subr.mxu0 0.0
    %1818 = vmatpush2.msra.mxu0 0.0
    %1819 = vmatprep.subr.mxu0 0.0
    %1820 = vmatpush2.msra.mxu0 0.0
    %1821 = vmatprep.mubr.f32.mxu0 0.0
    %1822 = vmatmul.mubr.f32.gmra.mxu0 %v1755
    %v1823 = vpop.f32.mrf.mxu0
    %v1824 = vadd.f32 0.0, %v1823
    %v1825 = vpop.f32.mrf.mxu0
    %1826 = vdwg.mxu0
    %1827 = vrot.lane.b32.xlu0 %v319, 40
    %v1828 = vpop.permute.xlu0 %1827
    %v1831 = vsel %vm325, %v1056, 0
    %1833 = vmatprep.subr.mxu0 0.0
    %1834 = vmatpush1.msra.mxu0 0.0
    %1835 = vmatprep.subr.mxu0 0.0
    %1836 = vmatpush1.msra.mxu0 0.0
    %1837 = vmatprep.subr.mxu0 0.0
    %1838 = vmatpush1.msra.mxu0 0.0
    %1839 = vmatprep.subr.mxu0 0.0
    %1840 = vmatpush1.msra.mxu0 0.0
    %1841 = vmatprep.subr.mxu0 0.0
    %1842 = vmatpush1.msra.mxu0 0.0
    %1843 = vmatprep.subr.mxu0 0.0
    %1844 = vmatpush1.msra.mxu0 0.0
    %1845 = vmatprep.subr.mxu0 0.0
    %1846 = vmatpush1.msra.mxu0 0.0
    %1847 = vmatprep.subr.mxu0 0.0
    %1848 = vmatpush1.msra.mxu0 0.0
    %1849 = vmatprep.subr.mxu0 0.0
    %1850 = vmatpush1.msra.mxu0 0.0
    %1851 = vmatprep.subr.mxu0 0.0
    %1852 = vmatpush1.msra.mxu0 0.0
    %1853 = vmatprep.subr.mxu0 0.0
    %1854 = vmatpush1.msra.mxu0 0.0
    %1855 = vmatprep.subr.mxu0 0.0
    %1856 = vmatpush1.msra.mxu0 0.0
    %1857 = vmatprep.subr.mxu0 0.0
    %1858 = vmatpush1.msra.mxu0 0.0
    %1859 = vmatprep.subr.mxu0 0.0
    %1860 = vmatpush1.msra.mxu0 0.0
    %1861 = vmatprep.subr.mxu0 0.0
    %1862 = vmatpush1.msra.mxu0 0.0
    %1863 = vmatprep.subr.mxu0 0.0
    %1864 = vmatpush1.msra.mxu0 %v1828
    %1865 = vmatprep.subr.mxu0 0.0
    %1866 = vmatpush2.msra.mxu0 0.0
    %1867 = vmatprep.subr.mxu0 0.0
    %1868 = vmatpush2.msra.mxu0 0.0
    %1869 = vmatprep.subr.mxu0 0.0
    %1870 = vmatpush2.msra.mxu0 0.0
    %1871 = vmatprep.subr.mxu0 0.0
    %1872 = vmatpush2.msra.mxu0 0.0
    %1873 = vmatprep.subr.mxu0 0.0
    %1874 = vmatpush2.msra.mxu0 0.0
    %1875 = vmatprep.subr.mxu0 0.0
    %1876 = vmatpush2.msra.mxu0 0.0
    %1877 = vmatprep.subr.mxu0 0.0
    %1878 = vmatpush2.msra.mxu0 0.0
    %1879 = vmatprep.subr.mxu0 0.0
    %1880 = vmatpush2.msra.mxu0 0.0
    %1881 = vmatprep.subr.mxu0 0.0
    %1882 = vmatpush2.msra.mxu0 0.0
    %1883 = vmatprep.subr.mxu0 0.0
    %1884 = vmatpush2.msra.mxu0 0.0
    %1885 = vmatprep.subr.mxu0 0.0
    %1886 = vmatpush2.msra.mxu0 0.0
    %1887 = vmatprep.subr.mxu0 0.0
    %1888 = vmatpush2.msra.mxu0 0.0
    %1889 = vmatprep.subr.mxu0 0.0
    %1890 = vmatpush2.msra.mxu0 0.0
    %1891 = vmatprep.subr.mxu0 0.0
    %1892 = vmatpush2.msra.mxu0 0.0
    %1893 = vmatprep.subr.mxu0 0.0
    %1894 = vmatpush2.msra.mxu0 0.0
    %1895 = vmatprep.subr.mxu0 0.0
    %1896 = vmatpush2.msra.mxu0 0.0
    %1897 = vmatprep.mubr.f32.mxu0 0.0
    %1898 = vmatmul.mubr.f32.gmra.mxu0 %v1831
    %v1899 = vpop.f32.mrf.mxu0
    %v1900 = vadd.f32 0.0, %v1899
    %v1901 = vpop.f32.mrf.mxu0
    %1902 = vdwg.mxu0
    %1904 = vrot.lane.b32.xlu0 %v1748, 8
    %v1905 = vpop.permute.xlu0 %1904
    %1908 = vrot.lane.b32.xlu0 %v1824, 16
    %v1909 = vpop.permute.xlu0 %1908
    %1912 = vrot.lane.b32.xlu0 %v1900, 24
    %v1913 = vpop.permute.xlu0 %1912
    %v1915 = vsel %vm325, %v1672, %v1905
    %v1916 = vsel %vm1374, %v1915, %v1909
    %v1917 = vsel %vm1376, %v1916, %v1913
    %v1919 = vsel %vm155, %v1917, 0
    %1921 = vmatprep.subr.mxu0 0.0
    %1922 = vmatpush1.msra.mxu0 0.0
    %1923 = vmatprep.subr.mxu0 0.0
    %1924 = vmatpush1.msra.mxu0 0.0
    %1925 = vmatprep.subr.mxu0 0.0
    %1926 = vmatpush1.msra.mxu0 0.0
    %1927 = vmatprep.subr.mxu0 0.0
    %1928 = vmatpush1.msra.mxu0 0.0
    %1929 = vmatprep.subr.mxu0 0.0
    %1930 = vmatpush1.msra.mxu0 0.0
    %1931 = vmatprep.subr.mxu0 0.0
    %1932 = vmatpush1.msra.mxu0 0.0
    %1933 = vmatprep.subr.mxu0 0.0
    %1934 = vmatpush1.msra.mxu0 0.0
    %1935 = vmatprep.subr.mxu0 0.0
    %1936 = vmatpush1.msra.mxu0 0.0
    %1937 = vmatprep.subr.mxu0 0.0
    %1938 = vmatpush1.msra.mxu0 0.0
    %1939 = vmatprep.subr.mxu0 0.0
    %1940 = vmatpush1.msra.mxu0 0.0
    %1941 = vmatprep.subr.mxu0 0.0
    %1942 = vmatpush1.msra.mxu0 0.0
    %1943 = vmatprep.subr.mxu0 0.0
    %1944 = vmatpush1.msra.mxu0 0.0
    %1945 = vmatprep.subr.mxu0 0.0
    %1946 = vmatpush1.msra.mxu0 %v98
    %1947 = vmatprep.subr.mxu0 0.0
    %1948 = vmatpush1.msra.mxu0 %v97
    %1949 = vmatprep.subr.mxu0 0.0
    %1950 = vmatpush1.msra.mxu0 %v96
    %1951 = vmatprep.subr.mxu0 0.0
    %1952 = vmatpush1.msra.mxu0 %v95
    %1953 = vmatprep.subr.mxu0 0.0
    %1954 = vmatpush2.msra.mxu0 0.0
    %1955 = vmatprep.subr.mxu0 0.0
    %1956 = vmatpush2.msra.mxu0 0.0
    %1957 = vmatprep.subr.mxu0 0.0
    %1958 = vmatpush2.msra.mxu0 0.0
    %1959 = vmatprep.subr.mxu0 0.0
    %1960 = vmatpush2.msra.mxu0 0.0
    %1961 = vmatprep.subr.mxu0 0.0
    %1962 = vmatpush2.msra.mxu0 0.0
    %1963 = vmatprep.subr.mxu0 0.0
    %1964 = vmatpush2.msra.mxu0 0.0
    %1965 = vmatprep.subr.mxu0 0.0
    %1966 = vmatpush2.msra.mxu0 0.0
    %1967 = vmatprep.subr.mxu0 0.0
    %1968 = vmatpush2.msra.mxu0 0.0
    %1969 = vmatprep.subr.mxu0 0.0
    %1970 = vmatpush2.msra.mxu0 0.0
    %1971 = vmatprep.subr.mxu0 0.0
    %1972 = vmatpush2.msra.mxu0 0.0
    %1973 = vmatprep.subr.mxu0 0.0
    %1974 = vmatpush2.msra.mxu0 0.0
    %1975 = vmatprep.subr.mxu0 0.0
    %1976 = vmatpush2.msra.mxu0 0.0
    %1977 = vmatprep.subr.mxu0 0.0
    %1978 = vmatpush2.msra.mxu0 0.0
    %1979 = vmatprep.subr.mxu0 0.0
    %1980 = vmatpush2.msra.mxu0 0.0
    %1981 = vmatprep.subr.mxu0 0.0
    %1982 = vmatpush2.msra.mxu0 0.0
    %1983 = vmatprep.subr.mxu0 0.0
    %1984 = vmatpush2.msra.mxu0 0.0
    %1985 = vmatprep.mubr.f32.mxu0 0.0
    %1986 = vmatmul.mubr.f32.gmra.mxu0 %v1919
    %v1987 = vpop.f32.mrf.mxu0
    %v1988 = vadd.f32 %v1382, %v1987
    %v1989 = vpop.f32.mrf.mxu0
    %1990 = vdwg.mxu0
    %v1992 = vadd.f32 %v1988, %v249
    %v1994 = vsel %vm155, %v1992, 0
    %1996 = vmatprep.subr.mxu0 0.0
    %1997 = vmatpush1.msra.mxu0 0.0
    %1998 = vmatprep.subr.mxu0 0.0
    %1999 = vmatpush1.msra.mxu0 0.0
    %2000 = vmatprep.subr.mxu0 0.0
    %2001 = vmatpush1.msra.mxu0 0.0
    %2002 = vmatprep.subr.mxu0 0.0
    %2003 = vmatpush1.msra.mxu0 0.0
    %2004 = vmatprep.subr.mxu0 0.0
    %2005 = vmatpush1.msra.mxu0 0.0
    %2006 = vmatprep.subr.mxu0 0.0
    %2007 = vmatpush1.msra.mxu0 0.0
    %2008 = vmatprep.subr.mxu0 0.0
    %2009 = vmatpush1.msra.mxu0 0.0
    %2010 = vmatprep.subr.mxu0 0.0
    %2011 = vmatpush1.msra.mxu0 0.0
    %2012 = vmatprep.subr.mxu0 0.0
    %2013 = vmatpush1.msra.mxu0 0.0
    %2014 = vmatprep.subr.mxu0 0.0
    %2015 = vmatpush1.msra.mxu0 0.0
    %2016 = vmatprep.subr.mxu0 0.0
    %2017 = vmatpush1.msra.mxu0 0.0
    %2018 = vmatprep.subr.mxu0 0.0
    %2019 = vmatpush1.msra.mxu0 0.0
    %2020 = vmatprep.subr.mxu0 0.0
    %2021 = vmatpush1.msra.mxu0 %v103
    %2022 = vmatprep.subr.mxu0 0.0
    %2023 = vmatpush1.msra.mxu0 %v102
    %2024 = vmatprep.subr.mxu0 0.0
    %2025 = vmatpush1.msra.mxu0 %v101
    %2026 = vmatprep.subr.mxu0 0.0
    %2027 = vmatpush1.msra.mxu0 %v100
    %2028 = vmatprep.subr.mxu0 0.0
    %2029 = vmatpush2.msra.mxu0 0.0
    %2030 = vmatprep.subr.mxu0 0.0
    %2031 = vmatpush2.msra.mxu0 0.0
    %2032 = vmatprep.subr.mxu0 0.0
    %2033 = vmatpush2.msra.mxu0 0.0
    %2034 = vmatprep.subr.mxu0 0.0
    %2035 = vmatpush2.msra.mxu0 0.0
    %2036 = vmatprep.subr.mxu0 0.0
    %2037 = vmatpush2.msra.mxu0 0.0
    %2038 = vmatprep.subr.mxu0 0.0
    %2039 = vmatpush2.msra.mxu0 0.0
    %2040 = vmatprep.subr.mxu0 0.0
    %2041 = vmatpush2.msra.mxu0 0.0
    %2042 = vmatprep.subr.mxu0 0.0
    %2043 = vmatpush2.msra.mxu0 0.0
    %2044 = vmatprep.subr.mxu0 0.0
    %2045 = vmatpush2.msra.mxu0 0.0
    %2046 = vmatprep.subr.mxu0 0.0
    %2047 = vmatpush2.msra.mxu0 0.0
    %2048 = vmatprep.subr.mxu0 0.0
    %2049 = vmatpush2.msra.mxu0 0.0
    %2050 = vmatprep.subr.mxu0 0.0
    %2051 = vmatpush2.msra.mxu0 0.0
    %2052 = vmatprep.subr.mxu0 0.0
    %2053 = vmatpush2.msra.mxu0 0.0
    %2054 = vmatprep.subr.mxu0 0.0
    %2055 = vmatpush2.msra.mxu0 0.0
    %2056 = vmatprep.subr.mxu0 0.0
    %2057 = vmatpush2.msra.mxu0 0.0
    %2058 = vmatprep.subr.mxu0 0.0
    %2059 = vmatpush2.msra.mxu0 0.0
    %2060 = vmatprep.mubr.f32.mxu0 0.0
    %2061 = vmatmul.mubr.f32.gmra.mxu0 %v1994
    %v2062 = vpop.f32.mrf.mxu0
    %v2063 = vadd.f32 %v1992, %v2062
    %v2064 = vpop.f32.mrf.mxu0
    %2065 = vdwg.mxu0
    %v2067 = vcombine.high %v2063, %v2063
    %v2069 = vunpack.c.l.s4 1966171168
    %v2070 = vunpack.c.0.s8 %v2069
    %v2071 = vlaneseq
    %v2072 = vshrl.u32 %v2071, 7
    %v2073 = vsub.s32 %v2070, %v2072
    %v2074 = vrot.slane %v2063, %v2073
    %v2076 = vunpack.c.l.s4 1966171168
    %v2077 = vunpack.c.0.s8 %v2076
    %v2078 = vlaneseq
    %v2079 = vshrl.u32 %v2078, 7
    %v2080 = vsub.s32 %v2077, %v2079
    %v2081 = vrot.slane %v2067, %v2080
    %v2082 = vcombine.high %v2074, %v2074
    %v2083 = vcombine.high %v2081, %v2081
    %v2085 = vunpack.c.l.s4 1966171168
    %v2086 = vunpack.c.0.s8 %v2085
    %v2087 = vlaneseq
    %v2088 = vshrl.u32 %v2087, 7
    %v2089 = vsub.s32 %v2086, %v2088
    %v2090 = vrot.slane %v2074, %v2089
    %v2092 = vunpack.c.l.s4 1966171168
    %v2093 = vunpack.c.0.s8 %v2092
    %v2094 = vlaneseq
    %v2095 = vshrl.u32 %v2094, 7
    %v2096 = vsub.s32 %v2093, %v2095
    %v2097 = vrot.slane %v2081, %v2096
    %v2099 = vunpack.c.l.s4 1966171168
    %v2100 = vunpack.c.0.s8 %v2099
    %v2101 = vlaneseq
    %v2102 = vshrl.u32 %v2101, 7
    %v2103 = vsub.s32 %v2100, %v2102
    %v2104 = vrot.slane %v2082, %v2103
    %v2106 = vunpack.c.l.s4 1966171168
    %v2107 = vunpack.c.0.s8 %v2106
    %v2108 = vlaneseq
    %v2109 = vshrl.u32 %v2108, 7
    %v2110 = vsub.s32 %v2107, %v2109
    %v2111 = vrot.slane %v2083, %v2110
    %v2112 = vcombine.high %v2090, %v2090
    %v2113 = vcombine.high %v2097, %v2097
    %v2114 = vcombine.high %v2104, %v2104
    %v2115 = vcombine.high %v2111, %v2111
    %2124 = vst.msk [vmem:[#allocation11 + $0x1] sm:$0x1] %vm1590, %v2090
    %2125 = vst.msk [vmem:[#allocation11 + $0x3] sm:$0x1] %vm1590, %v2104
    %2126 = vst.msk [vmem:[#allocation11 + $0x5] sm:$0x1] %vm1590, %v2112
    %2127 = vst.msk [vmem:[#allocation11 + $0x7] sm:$0x1] %vm1590, %v2114
    %2128 = vst.msk [vmem:[#allocation11 + $0x9] sm:$0x1] %vm1590, %v2097
    %2129 = vst.msk [vmem:[#allocation11 + $0xb] sm:$0x1] %vm1590, %v2111
    %2130 = vst.msk [vmem:[#allocation11 + $0xd] sm:$0x1] %vm1590, %v2113
    %2131 = vst.msk [vmem:[#allocation11 + $0xf] sm:$0x1] %vm1590, %v2115
    // Predicated region
    $region46: #{transformer_layer.1} parent=1 // pred_check
      _
    $region47: #{transformer_layer.1} parent=1 // pred_check_branch
      %2133 = sbr.rel (0) target = $region49
    $region48: #{transformer_layer.1} parent=1 // pred_region
      %s2135 = ssub.s32 256, 256
      %2136 = vsyncadd [#allocation4], %s2135
      %s2137 = sshll.u32 [#allocation11], 4
      %s2138 = int_to_ptr.vmem [resolvable:$true] %s2137
      %2143 = dma.vmem_to_hbm [thread:$0]  %s2138, 256, %s6, [#allocation4], 32, 32, 2
    $region49: #{transformer_layer.1} parent=1 // pred_fallthru
      _
    // Predicated region
    $region50: #{transformer_layer.1} parent=1 // pred_check
      _
    $region51: #{transformer_layer.1} parent=1 // pred_check_branch
      %2145 = sbr.rel (0) target = $region53
    $region52: #{transformer_layer.1} parent=1 // pred_region
      %2146 = dma.done [#allocation4], 256
    $region53: #{transformer_layer.1} parent=1 // pred_fallthru
      _
    %2147 = vsyncpa [#allocation3], 1
    %2148 = vsyncpa [#allocation6], 1
    %2149 = vsyncpa [#allocation9], 1
    %2150 = vsyncpa [#allocation4], 1

</llo_original>
